<compile_context>
chip_gen: v7x
topology: tpu7x:2x2x1
jax: 0.10.0
libtpu: 0.0.40
codegen_flags: <defaults>
</compile_context>

<pallas_src>
import functools

import jax
import jax.numpy as jnp
from jax.experimental import pallas as pl
from jax.experimental.pallas import tpu as pltpu

_HIGHEST = jax.lax.Precision.HIGHEST


def _lstm_decoder_kernel(x_ref, w1g_ref, bg_ref, whh_ref, wout_ref, bout_ref,
                         out_ref, h_scr, *, seq_len, hidden_dim, vocab_size):
    f32 = jnp.float32
    mm = w1g_ref.dtype           # matmul operand dtype (f32 demo, bf16 prod)
    H = hidden_dim
    D = 2 * H                    # packed hidden width  [h_fwd | h_bwd]
    GP = 8 * H                   # packed gate width per step (both directions)
    T = seq_len
    V = vocab_size
    Bb = x_ref.shape[0]          # batch tile

    x = x_ref[...].astype(mm)

    # One fused input-projection matmul (Linear + dropout-identity + weight_ih
    # fold done in the wrapper) producing lane-packed gate pre-activations for
    # every timestep of BOTH directions:
    #   columns [s*GP:(s+1)*GP] belong to loop iteration s, laid out as
    #   [i_f i_b | f_f f_b | g_f g_b | o_f o_b]; the forward direction is at
    #   time s and the backward direction at time T-1-s.  The *2 of the tanh
    #   gate (tanh(z) = 2*sigmoid(2z) - 1) is already folded into the weights.
    gates_in = (jnp.dot(x, w1g_ref[...], preferred_element_type=f32)
                + bg_ref[...])                                   # (Bb, T*8H)

    whh = whh_ref[...]           # (2H, 8H) block-structured recurrent weight

    h = jnp.zeros((Bb, D), f32)  # [h_fwd | h_bwd]
    c = jnp.zeros((Bb, D), f32)  # [c_fwd | c_bwd]

    # Only h and c are loop-carried; per-step outputs spill to VMEM scratch.
    for s in range(T):
        pre = gates_in[:, s * GP:(s + 1) * GP]
        gates = pre + jnp.dot(h.astype(mm), whh, preferred_element_type=f32)
        # Single EUP pass over the packed 8H gate tile; tanh gate recovered
        # with a cheap VPU fixup (the *2 scaling lives in the weights).
        act = jax.nn.sigmoid(gates)
        i_g = act[:, 0:D]
        f_g = act[:, D:2 * D]
        g_g = 2.0 * act[:, 2 * D:3 * D] - 1.0
        o_g = act[:, 3 * D:4 * D]
        c = f_g * c + i_g * g_g
        h = o_g * jnp.tanh(c)
        # Store this step's hidden states into the time-major scratch layout
        # h_scr[:, t*2H:(t+1)*2H] = [h_fwd(t) | h_bwd(t)].
        tf = s
        tb = T - 1 - s
        h_scr[:, tf * D:tf * D + H] = h[:, 0:H]          # forward dir, time tf
        h_scr[:, tb * D + H:(tb + 1) * D] = h[:, H:D]    # backward dir, time tb

    # ReLU + time-distributed output Linear: T FLOP-minimal matmuls against
    # the original (2H, V) weight, written into the lane-dense (Bb, T*V) block.
    wout = wout_ref[...]
    bout = bout_ref[...]
    for t in range(T):
        h_t = jnp.maximum(h_scr[:, t * D:(t + 1) * D], 0.0)
        logits_t = (jnp.dot(h_t.astype(mm), wout, preferred_element_type=f32)
                    + bout)
        out_ref[:, t * V:(t + 1) * V] = logits_t.astype(out_ref.dtype)


def _prepare_kernel_params(params, *, seq_len, hidden_dim, matmul_dtype):
    """Fold weight_ih into the first Linear, lane-pack the two directions,
    and pre-scale the tanh-gate columns by 2 (tanh(z) = 2*sigmoid(2z) - 1)."""
    f32 = jnp.float32
    H = hidden_dim
    D = 2 * H                   # lstm_dim
    T = seq_len

    w1 = params["w1"].astype(f32)        # (F, D*T)
    b1 = params["b1"].astype(f32)        # (1, D*T)
    wih_f = params["wih_f"].astype(f32)  # (D, 4H)
    wih_b = params["wih_b"].astype(f32)
    whh_f = params["whh_f"].astype(f32)  # (H, 4H)
    whh_b = params["whh_b"].astype(f32)
    b_f = params["b_f"].astype(f32)      # (1, 4H)
    b_b = params["b_b"].astype(f32)

    def dir_fold(t, wih, b):
        w_blk = w1[:, t * D:(t + 1) * D]                       # (F, D)
        b_blk = b1[:, t * D:(t + 1) * D]                       # (1, D)
        wg = jnp.dot(w_blk, wih, precision=_HIGHEST)           # (F, 4H)
        bg = jnp.dot(b_blk, wih, precision=_HIGHEST) + b       # (1, 4H)
        return wg, bg

    # Packed per-iteration layout: [i_f i_b | f_f f_b | g_f g_b | o_f o_b],
    # forward at time s, backward at time T-1-s.  PyTorch gate order i,f,g,o
    # means the g (tanh) gate is block k == 2; scale its columns by 2.
    w_cols, b_cols = [], []
    for s in range(T):
        wgf, bgf = dir_fold(s, wih_f, b_f)
        wgb, bgb = dir_fold(T - 1 - s, wih_b, b_b)
        for k in range(4):
            scale = 2.0 if k == 2 else 1.0
            sl = slice(k * H, (k + 1) * H)
            w_cols += [scale * wgf[:, sl], scale * wgb[:, sl]]
            b_cols += [scale * bgf[:, sl], scale * bgb[:, sl]]
    w1g = jnp.concatenate(w_cols, axis=1)                      # (F, T*8H)
    bg = jnp.concatenate(b_cols, axis=1)                       # (1, T*8H)

    # Block-structured recurrent weight (2H, 8H): rows 0:H act on h_fwd (only
    # feeding the forward-gate columns), rows H:2H act on h_bwd.
    zH = jnp.zeros((H, H), f32)
    whh_cols = []
    for k in range(4):
        scale = 2.0 if k == 2 else 1.0
        sl = slice(k * H, (k + 1) * H)
        whh_cols.append(jnp.concatenate([scale * whh_f[:, sl], zH], axis=0))
        whh_cols.append(jnp.concatenate([zH, scale * whh_b[:, sl]], axis=0))
    whh_pack = jnp.concatenate(whh_cols, axis=1)               # (2H, 8H)

    wout = params["wout"].astype(f32)                          # (2H, V)
    bout = params["bout"].astype(f32)                          # (1, V)

    return {
        # MXU operands (cast to bf16 on v6e/v7x via matmul_dtype); biases f32.
        "w1g": w1g.astype(matmul_dtype),
        "whh": whh_pack.astype(matmul_dtype),
        "wout": wout.astype(matmul_dtype),
        "bg": bg,
        "bout": bout,
    }


def _pick_block_b(batch):
    # Prefer the largest tile that still leaves >= 2 grid steps: v7x has two
    # TensorCores, so a single grid step leaves one core idle.  On v6e (one
    # TC, 256-wide MXU) pass block_b=256 explicitly when B and VMEM allow.
    for cand in (256, 128, 64, 32, 16, 8):
        if batch % cand == 0 and batch // cand >= 2:
            return cand
    for cand in (256, 128, 64, 32, 16, 8):
        if batch % cand == 0:
            return cand
    return batch   # tiny/odd batch: single block (== full array dim, legal)


def lstm_decoder_forward(x, params, *, seq_len, hidden_dim, vocab_size,
                         mask=None, block_b=None, matmul_dtype=jnp.float32):
    B, F = x.shape
    T, H, V = seq_len, hidden_dim, vocab_size
    kp = _prepare_kernel_params(params, seq_len=T, hidden_dim=H,
                                matmul_dtype=matmul_dtype)

    if block_b is None:
        block_b = _pick_block_b(B)
    assert B % block_b == 0
    nb = B // block_b

    kernel = functools.partial(_lstm_decoder_kernel, seq_len=T, hidden_dim=H,
                               vocab_size=V)

    def full_spec(arr):
        return pl.BlockSpec(arr.shape, lambda i: (0, 0))

    out_flat = pl.pallas_call(
        kernel,
        out_shape=jax.ShapeDtypeStruct((B, T * V), jnp.float32),
        grid=(nb,),
        in_specs=[
            pl.BlockSpec((block_b, F), lambda i: (i, 0)),
            full_spec(kp["w1g"]),
            full_spec(kp["bg"]),
            full_spec(kp["whh"]),
            full_spec(kp["wout"]),
            full_spec(kp["bout"]),
        ],
        out_specs=pl.BlockSpec((block_b, T * V), lambda i: (i, 0)),
        scratch_shapes=[pltpu.VMEM((block_b, T * 2 * H), jnp.float32)],
        compiler_params=pltpu.CompilerParams(
            dimension_semantics=("parallel",)),
    )(x.astype(matmul_dtype), kp["w1g"], kp["bg"], kp["whh"],
      kp["wout"], kp["bout"])

    # Lane-dense kernel layout -> (B, seq_len, vocab); reshape only, no transpose.
    logits = out_flat.reshape(B, T, V)

    if mask is not None:
        # Matches PyTorch masked_fill(-inf) + restore of channel 0.
        m = jnp.broadcast_to(mask[:, :, None], logits.shape)
        masked = jnp.where(m == 0, -jnp.inf, logits)
        masked = masked.at[:, :, 0].set(logits[:, :, 0])
        logits = masked
    return logits


def _reference_forward(x, params, *, seq_len, hidden_dim, vocab_size):
    """Pure-JAX reference mirroring the PyTorch forward (inference)."""
    H = hidden_dim
    D = 2 * H
    B = x.shape[0]
    dense = jnp.dot(x, params["w1"], precision=_HIGHEST) + params["b1"]
    xs = dense.reshape(B, seq_len, D)

    def run_dir(wih, whh, b, reverse):
        h = jnp.zeros((B, H), jnp.float32)
        c = jnp.zeros((B, H), jnp.float32)
        outs = [None] * seq_len
        order = range(seq_len - 1, -1, -1) if reverse else range(seq_len)
        for t in order:
            g = (jnp.dot(xs[:, t, :], wih, precision=_HIGHEST)
                 + jnp.dot(h, whh, precision=_HIGHEST) + b)
            i = jax.nn.sigmoid(g[:, 0:H])
            f = jax.nn.sigmoid(g[:, H:2 * H])
            gg = jnp.tanh(g[:, 2 * H:3 * H])
            o = jax.nn.sigmoid(g[:, 3 * H:4 * H])
            c = f * c + i * gg
            h = o * jnp.tanh(c)
            outs[t] = h
        return jnp.stack(outs, axis=1)

    fwd = run_dir(params["wih_f"], params["whh_f"], params["b_f"], False)
    bwd = run_dir(params["wih_b"], params["whh_b"], params["b_b"], True)
    out = jnp.maximum(jnp.concatenate([fwd, bwd], axis=-1), 0.0)
    return jnp.dot(out, params["wout"], precision=_HIGHEST) + params["bout"]


def init_params(key, *, feature_dim, seq_len, hidden_dim, vocab_size):
    H = hidden_dim
    D = 2 * H
    ks = jax.random.split(key, 11)
    n = lambda k, shape: (0.1 * jax.random.normal(k, shape)).astype(jnp.float32)
    return {
        # nn.Linear(feature_dim, lstm_dim*seq_len), stored pre-transposed.
        "w1": n(ks[0], (feature_dim, D * seq_len)),
        "b1": n(ks[1], (1, D * seq_len)),
        # LSTM forward dir: weight_ih (4H, D)^T, weight_hh (4H, H)^T, b_ih+b_hh.
        "wih_f": n(ks[2], (D, 4 * H)),
        "whh_f": n(ks[3], (H, 4 * H)),
        "b_f": n(ks[4], (1, 4 * H)),
        # LSTM reverse dir.
        "wih_b": n(ks[5], (D, 4 * H)),
        "whh_b": n(ks[6], (H, 4 * H)),
        "b_b": n(ks[7], (1, 4 * H)),
        # TimeDistributed Linear(lstm_dim, vocab_size), pre-transposed.
        "wout": n(ks[8], (D, vocab_size)),
        "bout": n(ks[9], (1, vocab_size)),
    }


if __name__ == "__main__":
    B = 8            # fills the f32 8-sublane tile at the demo scale
    feature_dim = 16
    seq_len = 8
    hidden_dim = 32
    vocab_size = 16

    key = jax.random.PRNGKey(0)
    kx, kp = jax.random.split(key)
    x = jax.random.normal(kx, (B, feature_dim), dtype=jnp.float32)
    params = init_params(kp, feature_dim=feature_dim, seq_len=seq_len,
                         hidden_dim=hidden_dim, vocab_size=vocab_size)

    # matmul_dtype=jnp.bfloat16 is the production setting on v6e/v7x; the demo
    # stays in f32 so the reference comparison below is tight.
    logits = lstm_decoder_forward(
        x, params, seq_len=seq_len, hidden_dim=hidden_dim,
        vocab_size=vocab_size, matmul_dtype=jnp.float32)
    logits = jax.block_until_ready(logits)

    ref = _reference_forward(x, params, seq_len=seq_len,
                             hidden_dim=hidden_dim, vocab_size=vocab_size)
    assert logits.shape == (B, seq_len, vocab_size)
    assert jnp.allclose(logits, ref, atol=5e-3, rtol=5e-3), (
        float(jnp.max(jnp.abs(logits - ref))))

    print("KERNEL_OK")
</pallas_src>

<mosaic_0001>
module attributes {stable_mosaic.version = 11 : i64} {
  func.func @_lstm_decoder_kernel(%arg0: i32, %arg1: memref<8x16xf32, #tpu.memory_space<vmem>>, %arg2: memref<16x2048xf32, #tpu.memory_space<vmem>>, %arg3: memref<1x2048xf32, #tpu.memory_space<vmem>>, %arg4: memref<64x256xf32, #tpu.memory_space<vmem>>, %arg5: memref<64x16xf32, #tpu.memory_space<vmem>>, %arg6: memref<1x16xf32, #tpu.memory_space<vmem>>, %arg7: memref<8x128xf32, #tpu.memory_space<vmem>>, %arg8: memref<8x512xf32, #tpu.memory_space<vmem>>) attributes {dimension_semantics = [#tpu.dimension_semantics<parallel>], iteration_bounds = array<i64: 1>, scalar_prefetch = 0 : i64, scratch_operands = 1 : i64, tpu.core_type = #tpu.core_type<tc>, window_params = [{transform_indices = @transform_0, window_bounds = array<i64: 8, 16>}, {pipeline_mode = #tpu.pipeline_mode<synchronous>, transform_indices = @transform_1, window_bounds = array<i64: 16, 2048>}, {pipeline_mode = #tpu.pipeline_mode<synchronous>, transform_indices = @transform_2, window_bounds = array<i64: 1, 2048>}, {pipeline_mode = #tpu.pipeline_mode<synchronous>, transform_indices = @transform_3, window_bounds = array<i64: 64, 256>}, {pipeline_mode = #tpu.pipeline_mode<synchronous>, transform_indices = @transform_4, window_bounds = array<i64: 64, 16>}, {pipeline_mode = #tpu.pipeline_mode<synchronous>, transform_indices = @transform_5, window_bounds = array<i64: 1, 16>}, {transform_indices = @transform_6, window_bounds = array<i64: 8, 128>}]} {
    %c0 = arith.constant 0 : index
    %c0_0 = arith.constant 0 : index
    %0 = vector.load %arg1[%c0, %c0_0] : memref<8x16xf32, #tpu.memory_space<vmem>>, vector<8x16xf32>
    %c0_1 = arith.constant 0 : index
    %c0_2 = arith.constant 0 : index
    %1 = vector.load %arg2[%c0_1, %c0_2] : memref<16x2048xf32, #tpu.memory_space<vmem>>, vector<16x2048xf32>
    %cst = arith.constant dense<0.000000e+00> : vector<8x2048xf32>
    %2 = tpu.matmul %0, %1, %cst {dimension_numbers = #tpu.dot_dimension_numbers<[1], [0], [0], [1], [0, 0, 1, 1], [], []>} : vector<8x16xf32>, vector<16x2048xf32>, vector<8x2048xf32> -> vector<8x2048xf32>
    %c0_3 = arith.constant 0 : index
    %c0_4 = arith.constant 0 : index
    %3 = vector.load %arg3[%c0_3, %c0_4] : memref<1x2048xf32, #tpu.memory_space<vmem>>, vector<1x2048xf32>
    %4 = vector.broadcast %3 : vector<1x2048xf32> to vector<8x2048xf32>
    %5 = arith.addf %2, %4 : vector<8x2048xf32>
    %c0_5 = arith.constant 0 : index
    %c0_6 = arith.constant 0 : index
    %6 = vector.load %arg4[%c0_5, %c0_6] : memref<64x256xf32, #tpu.memory_space<vmem>>, vector<64x256xf32>
    %cst_7 = arith.constant 0.000000e+00 : f32
    %7 = vector.broadcast %cst_7 : f32 to vector<8x64xf32>
    %cst_8 = arith.constant 0.000000e+00 : f32
    %8 = vector.broadcast %cst_8 : f32 to vector<8x64xf32>
    %9 = vector.extract_strided_slice %5 {offsets = [0, 0], sizes = [8, 256], strides = [1, 1]} : vector<8x2048xf32> to vector<8x256xf32>
    %cst_9 = arith.constant dense<0.000000e+00> : vector<8x256xf32>
    %10 = tpu.matmul %7, %6, %cst_9 {dimension_numbers = #tpu.dot_dimension_numbers<[1], [0], [0], [1], [0, 0, 1, 1], [], []>} : vector<8x64xf32>, vector<64x256xf32>, vector<8x256xf32> -> vector<8x256xf32>
    %11 = arith.addf %9, %10 : vector<8x256xf32>
    %12 = arith.negf %11 : vector<8x256xf32>
    %13 = math.exp %12 : vector<8x256xf32>
    %cst_10 = arith.constant 1.000000e+00 : f32
    %14 = vector.broadcast %cst_10 : f32 to vector<8x256xf32>
    %15 = arith.addf %14, %13 : vector<8x256xf32>
    %16 = arith.divf %14, %15 : vector<8x256xf32>
    %17 = vector.extract_strided_slice %16 {offsets = [0, 0], sizes = [8, 64], strides = [1, 1]} : vector<8x256xf32> to vector<8x64xf32>
    %18 = vector.extract_strided_slice %16 {offsets = [0, 64], sizes = [8, 64], strides = [1, 1]} : vector<8x256xf32> to vector<8x64xf32>
    %19 = vector.extract_strided_slice %16 {offsets = [0, 128], sizes = [8, 64], strides = [1, 1]} : vector<8x256xf32> to vector<8x64xf32>
    %cst_11 = arith.constant 2.000000e+00 : f32
    %20 = vector.broadcast %cst_11 : f32 to vector<8x64xf32>
    %21 = arith.mulf %20, %19 : vector<8x64xf32>
    %cst_12 = arith.constant 1.000000e+00 : f32
    %22 = vector.broadcast %cst_12 : f32 to vector<8x64xf32>
    %23 = arith.subf %21, %22 : vector<8x64xf32>
    %24 = vector.extract_strided_slice %16 {offsets = [0, 192], sizes = [8, 64], strides = [1, 1]} : vector<8x256xf32> to vector<8x64xf32>
    %25 = arith.mulf %18, %8 : vector<8x64xf32>
    %26 = arith.mulf %17, %23 : vector<8x64xf32>
    %27 = arith.addf %25, %26 : vector<8x64xf32>
    %28 = math.tanh %27 : vector<8x64xf32>
    %29 = arith.mulf %24, %28 : vector<8x64xf32>
    %30 = vector.extract_strided_slice %29 {offsets = [0, 0], sizes = [8, 32], strides = [1, 1]} : vector<8x64xf32> to vector<8x32xf32>
    %c0_13 = arith.constant 0 : index
    %c0_14 = arith.constant 0 : index
    %31 = vector.load %arg8[%c0_13, %c0_14] : memref<8x512xf32, #tpu.memory_space<vmem>>, vector<8x32xf32>
    tpu.vector_store %arg8[%c0_13, %c0_14], %30 {strides = array<i32>} : memref<8x512xf32, #tpu.memory_space<vmem>>, vector<8x32xf32>,
    %32 = vector.extract_strided_slice %29 {offsets = [0, 32], sizes = [8, 32], strides = [1, 1]} : vector<8x64xf32> to vector<8x32xf32>
    %c0_15 = arith.constant 0 : index
    %c480 = arith.constant 480 : index
    %33 = vector.load %arg8[%c0_15, %c480] : memref<8x512xf32, #tpu.memory_space<vmem>>, vector<8x32xf32>
    tpu.vector_store %arg8[%c0_15, %c480], %32 {strides = array<i32>} : memref<8x512xf32, #tpu.memory_space<vmem>>, vector<8x32xf32>,
    %34 = vector.extract_strided_slice %5 {offsets = [0, 256], sizes = [8, 256], strides = [1, 1]} : vector<8x2048xf32> to vector<8x256xf32>
    %cst_16 = arith.constant dense<0.000000e+00> : vector<8x256xf32>
    %35 = tpu.matmul %29, %6, %cst_16 {dimension_numbers = #tpu.dot_dimension_numbers<[1], [0], [0], [1], [0, 0, 1, 1], [], []>} : vector<8x64xf32>, vector<64x256xf32>, vector<8x256xf32> -> vector<8x256xf32>
    %36 = arith.addf %34, %35 : vector<8x256xf32>
    %37 = arith.negf %36 : vector<8x256xf32>
    %38 = math.exp %37 : vector<8x256xf32>
    %cst_17 = arith.constant 1.000000e+00 : f32
    %39 = vector.broadcast %cst_17 : f32 to vector<8x256xf32>
    %40 = arith.addf %39, %38 : vector<8x256xf32>
    %41 = arith.divf %39, %40 : vector<8x256xf32>
    %42 = vector.extract_strided_slice %41 {offsets = [0, 0], sizes = [8, 64], strides = [1, 1]} : vector<8x256xf32> to vector<8x64xf32>
    %43 = vector.extract_strided_slice %41 {offsets = [0, 64], sizes = [8, 64], strides = [1, 1]} : vector<8x256xf32> to vector<8x64xf32>
    %44 = vector.extract_strided_slice %41 {offsets = [0, 128], sizes = [8, 64], strides = [1, 1]} : vector<8x256xf32> to vector<8x64xf32>
    %cst_18 = arith.constant 2.000000e+00 : f32
    %45 = vector.broadcast %cst_18 : f32 to vector<8x64xf32>
    %46 = arith.mulf %45, %44 : vector<8x64xf32>
    %cst_19 = arith.constant 1.000000e+00 : f32
    %47 = vector.broadcast %cst_19 : f32 to vector<8x64xf32>
    %48 = arith.subf %46, %47 : vector<8x64xf32>
    %49 = vector.extract_strided_slice %41 {offsets = [0, 192], sizes = [8, 64], strides = [1, 1]} : vector<8x256xf32> to vector<8x64xf32>
    %50 = arith.mulf %43, %27 : vector<8x64xf32>
    %51 = arith.mulf %42, %48 : vector<8x64xf32>
    %52 = arith.addf %50, %51 : vector<8x64xf32>
    %53 = math.tanh %52 : vector<8x64xf32>
    %54 = arith.mulf %49, %53 : vector<8x64xf32>
    %55 = vector.extract_strided_slice %54 {offsets = [0, 0], sizes = [8, 32], strides = [1, 1]} : vector<8x64xf32> to vector<8x32xf32>
    %c0_20 = arith.constant 0 : index
    %c64 = arith.constant 64 : index
    %56 = vector.load %arg8[%c0_20, %c64] : memref<8x512xf32, #tpu.memory_space<vmem>>, vector<8x32xf32>
    tpu.vector_store %arg8[%c0_20, %c64], %55 {strides = array<i32>} : memref<8x512xf32, #tpu.memory_space<vmem>>, vector<8x32xf32>,
    %57 = vector.extract_strided_slice %54 {offsets = [0, 32], sizes = [8, 32], strides = [1, 1]} : vector<8x64xf32> to vector<8x32xf32>
    %c0_21 = arith.constant 0 : index
    %c416 = arith.constant 416 : index
    %58 = vector.load %arg8[%c0_21, %c416] : memref<8x512xf32, #tpu.memory_space<vmem>>, vector<8x32xf32>
    tpu.vector_store %arg8[%c0_21, %c416], %57 {strides = array<i32>} : memref<8x512xf32, #tpu.memory_space<vmem>>, vector<8x32xf32>,
    %59 = vector.extract_strided_slice %5 {offsets = [0, 512], sizes = [8, 256], strides = [1, 1]} : vector<8x2048xf32> to vector<8x256xf32>
    %cst_22 = arith.constant dense<0.000000e+00> : vector<8x256xf32>
    %60 = tpu.matmul %54, %6, %cst_22 {dimension_numbers = #tpu.dot_dimension_numbers<[1], [0], [0], [1], [0, 0, 1, 1], [], []>} : vector<8x64xf32>, vector<64x256xf32>, vector<8x256xf32> -> vector<8x256xf32>
    %61 = arith.addf %59, %60 : vector<8x256xf32>
    %62 = arith.negf %61 : vector<8x256xf32>
    %63 = math.exp %62 : vector<8x256xf32>
    %cst_23 = arith.constant 1.000000e+00 : f32
    %64 = vector.broadcast %cst_23 : f32 to vector<8x256xf32>
    %65 = arith.addf %64, %63 : vector<8x256xf32>
    %66 = arith.divf %64, %65 : vector<8x256xf32>
    %67 = vector.extract_strided_slice %66 {offsets = [0, 0], sizes = [8, 64], strides = [1, 1]} : vector<8x256xf32> to vector<8x64xf32>
    %68 = vector.extract_strided_slice %66 {offsets = [0, 64], sizes = [8, 64], strides = [1, 1]} : vector<8x256xf32> to vector<8x64xf32>
    %69 = vector.extract_strided_slice %66 {offsets = [0, 128], sizes = [8, 64], strides = [1, 1]} : vector<8x256xf32> to vector<8x64xf32>
    %cst_24 = arith.constant 2.000000e+00 : f32
    %70 = vector.broadcast %cst_24 : f32 to vector<8x64xf32>
    %71 = arith.mulf %70, %69 : vector<8x64xf32>
    %cst_25 = arith.constant 1.000000e+00 : f32
    %72 = vector.broadcast %cst_25 : f32 to vector<8x64xf32>
    %73 = arith.subf %71, %72 : vector<8x64xf32>
    %74 = vector.extract_strided_slice %66 {offsets = [0, 192], sizes = [8, 64], strides = [1, 1]} : vector<8x256xf32> to vector<8x64xf32>
    %75 = arith.mulf %68, %52 : vector<8x64xf32>
    %76 = arith.mulf %67, %73 : vector<8x64xf32>
    %77 = arith.addf %75, %76 : vector<8x64xf32>
    %78 = math.tanh %77 : vector<8x64xf32>
    %79 = arith.mulf %74, %78 : vector<8x64xf32>
    %80 = vector.extract_strided_slice %79 {offsets = [0, 0], sizes = [8, 32], strides = [1, 1]} : vector<8x64xf32> to vector<8x32xf32>
    %c0_26 = arith.constant 0 : index
    %c128 = arith.constant 128 : index
    %81 = vector.load %arg8[%c0_26, %c128] : memref<8x512xf32, #tpu.memory_space<vmem>>, vector<8x32xf32>
    tpu.vector_store %arg8[%c0_26, %c128], %80 {strides = array<i32>} : memref<8x512xf32, #tpu.memory_space<vmem>>, vector<8x32xf32>,
    %82 = vector.extract_strided_slice %79 {offsets = [0, 32], sizes = [8, 32], strides = [1, 1]} : vector<8x64xf32> to vector<8x32xf32>
    %c0_27 = arith.constant 0 : index
    %c352 = arith.constant 352 : index
    %83 = vector.load %arg8[%c0_27, %c352] : memref<8x512xf32, #tpu.memory_space<vmem>>, vector<8x32xf32>
    tpu.vector_store %arg8[%c0_27, %c352], %82 {strides = array<i32>} : memref<8x512xf32, #tpu.memory_space<vmem>>, vector<8x32xf32>,
    %84 = vector.extract_strided_slice %5 {offsets = [0, 768], sizes = [8, 256], strides = [1, 1]} : vector<8x2048xf32> to vector<8x256xf32>
    %cst_28 = arith.constant dense<0.000000e+00> : vector<8x256xf32>
    %85 = tpu.matmul %79, %6, %cst_28 {dimension_numbers = #tpu.dot_dimension_numbers<[1], [0], [0], [1], [0, 0, 1, 1], [], []>} : vector<8x64xf32>, vector<64x256xf32>, vector<8x256xf32> -> vector<8x256xf32>
    %86 = arith.addf %84, %85 : vector<8x256xf32>
    %87 = arith.negf %86 : vector<8x256xf32>
    %88 = math.exp %87 : vector<8x256xf32>
    %cst_29 = arith.constant 1.000000e+00 : f32
    %89 = vector.broadcast %cst_29 : f32 to vector<8x256xf32>
    %90 = arith.addf %89, %88 : vector<8x256xf32>
    %91 = arith.divf %89, %90 : vector<8x256xf32>
    %92 = vector.extract_strided_slice %91 {offsets = [0, 0], sizes = [8, 64], strides = [1, 1]} : vector<8x256xf32> to vector<8x64xf32>
    %93 = vector.extract_strided_slice %91 {offsets = [0, 64], sizes = [8, 64], strides = [1, 1]} : vector<8x256xf32> to vector<8x64xf32>
    %94 = vector.extract_strided_slice %91 {offsets = [0, 128], sizes = [8, 64], strides = [1, 1]} : vector<8x256xf32> to vector<8x64xf32>
    %cst_30 = arith.constant 2.000000e+00 : f32
    %95 = vector.broadcast %cst_30 : f32 to vector<8x64xf32>
    %96 = arith.mulf %95, %94 : vector<8x64xf32>
    %cst_31 = arith.constant 1.000000e+00 : f32
    %97 = vector.broadcast %cst_31 : f32 to vector<8x64xf32>
    %98 = arith.subf %96, %97 : vector<8x64xf32>
    %99 = vector.extract_strided_slice %91 {offsets = [0, 192], sizes = [8, 64], strides = [1, 1]} : vector<8x256xf32> to vector<8x64xf32>
    %100 = arith.mulf %93, %77 : vector<8x64xf32>
    %101 = arith.mulf %92, %98 : vector<8x64xf32>
    %102 = arith.addf %100, %101 : vector<8x64xf32>
    %103 = math.tanh %102 : vector<8x64xf32>
    %104 = arith.mulf %99, %103 : vector<8x64xf32>
    %105 = vector.extract_strided_slice %104 {offsets = [0, 0], sizes = [8, 32], strides = [1, 1]} : vector<8x64xf32> to vector<8x32xf32>
    %c0_32 = arith.constant 0 : index
    %c192 = arith.constant 192 : index
    %106 = vector.load %arg8[%c0_32, %c192] : memref<8x512xf32, #tpu.memory_space<vmem>>, vector<8x32xf32>
    tpu.vector_store %arg8[%c0_32, %c192], %105 {strides = array<i32>} : memref<8x512xf32, #tpu.memory_space<vmem>>, vector<8x32xf32>,
    %107 = vector.extract_strided_slice %104 {offsets = [0, 32], sizes = [8, 32], strides = [1, 1]} : vector<8x64xf32> to vector<8x32xf32>
    %c0_33 = arith.constant 0 : index
    %c288 = arith.constant 288 : index
    %108 = vector.load %arg8[%c0_33, %c288] : memref<8x512xf32, #tpu.memory_space<vmem>>, vector<8x32xf32>
    tpu.vector_store %arg8[%c0_33, %c288], %107 {strides = array<i32>} : memref<8x512xf32, #tpu.memory_space<vmem>>, vector<8x32xf32>,
    %109 = vector.extract_strided_slice %5 {offsets = [0, 1024], sizes = [8, 256], strides = [1, 1]} : vector<8x2048xf32> to vector<8x256xf32>
    %cst_34 = arith.constant dense<0.000000e+00> : vector<8x256xf32>
    %110 = tpu.matmul %104, %6, %cst_34 {dimension_numbers = #tpu.dot_dimension_numbers<[1], [0], [0], [1], [0, 0, 1, 1], [], []>} : vector<8x64xf32>, vector<64x256xf32>, vector<8x256xf32> -> vector<8x256xf32>
    %111 = arith.addf %109, %110 : vector<8x256xf32>
    %112 = arith.negf %111 : vector<8x256xf32>
    %113 = math.exp %112 : vector<8x256xf32>
    %cst_35 = arith.constant 1.000000e+00 : f32
    %114 = vector.broadcast %cst_35 : f32 to vector<8x256xf32>
    %115 = arith.addf %114, %113 : vector<8x256xf32>
    %116 = arith.divf %114, %115 : vector<8x256xf32>
    %117 = vector.extract_strided_slice %116 {offsets = [0, 0], sizes = [8, 64], strides = [1, 1]} : vector<8x256xf32> to vector<8x64xf32>
    %118 = vector.extract_strided_slice %116 {offsets = [0, 64], sizes = [8, 64], strides = [1, 1]} : vector<8x256xf32> to vector<8x64xf32>
    %119 = vector.extract_strided_slice %116 {offsets = [0, 128], sizes = [8, 64], strides = [1, 1]} : vector<8x256xf32> to vector<8x64xf32>
    %cst_36 = arith.constant 2.000000e+00 : f32
    %120 = vector.broadcast %cst_36 : f32 to vector<8x64xf32>
    %121 = arith.mulf %120, %119 : vector<8x64xf32>
    %cst_37 = arith.constant 1.000000e+00 : f32
    %122 = vector.broadcast %cst_37 : f32 to vector<8x64xf32>
    %123 = arith.subf %121, %122 : vector<8x64xf32>
    %124 = vector.extract_strided_slice %116 {offsets = [0, 192], sizes = [8, 64], strides = [1, 1]} : vector<8x256xf32> to vector<8x64xf32>
    %125 = arith.mulf %118, %102 : vector<8x64xf32>
    %126 = arith.mulf %117, %123 : vector<8x64xf32>
    %127 = arith.addf %125, %126 : vector<8x64xf32>
    %128 = math.tanh %127 : vector<8x64xf32>
    %129 = arith.mulf %124, %128 : vector<8x64xf32>
    %130 = vector.extract_strided_slice %129 {offsets = [0, 0], sizes = [8, 32], strides = [1, 1]} : vector<8x64xf32> to vector<8x32xf32>
    %c0_38 = arith.constant 0 : index
    %c256 = arith.constant 256 : index
    %131 = vector.load %arg8[%c0_38, %c256] : memref<8x512xf32, #tpu.memory_space<vmem>>, vector<8x32xf32>
    tpu.vector_store %arg8[%c0_38, %c256], %130 {strides = array<i32>} : memref<8x512xf32, #tpu.memory_space<vmem>>, vector<8x32xf32>,
    %132 = vector.extract_strided_slice %129 {offsets = [0, 32], sizes = [8, 32], strides = [1, 1]} : vector<8x64xf32> to vector<8x32xf32>
    %c0_39 = arith.constant 0 : index
    %c224 = arith.constant 224 : index
    %133 = vector.load %arg8[%c0_39, %c224] : memref<8x512xf32, #tpu.memory_space<vmem>>, vector<8x32xf32>
    tpu.vector_store %arg8[%c0_39, %c224], %132 {strides = array<i32>} : memref<8x512xf32, #tpu.memory_space<vmem>>, vector<8x32xf32>,
    %134 = vector.extract_strided_slice %5 {offsets = [0, 1280], sizes = [8, 256], strides = [1, 1]} : vector<8x2048xf32> to vector<8x256xf32>
    %cst_40 = arith.constant dense<0.000000e+00> : vector<8x256xf32>
    %135 = tpu.matmul %129, %6, %cst_40 {dimension_numbers = #tpu.dot_dimension_numbers<[1], [0], [0], [1], [0, 0, 1, 1], [], []>} : vector<8x64xf32>, vector<64x256xf32>, vector<8x256xf32> -> vector<8x256xf32>
    %136 = arith.addf %134, %135 : vector<8x256xf32>
    %137 = arith.negf %136 : vector<8x256xf32>
    %138 = math.exp %137 : vector<8x256xf32>
    %cst_41 = arith.constant 1.000000e+00 : f32
    %139 = vector.broadcast %cst_41 : f32 to vector<8x256xf32>
    %140 = arith.addf %139, %138 : vector<8x256xf32>
    %141 = arith.divf %139, %140 : vector<8x256xf32>
    %142 = vector.extract_strided_slice %141 {offsets = [0, 0], sizes = [8, 64], strides = [1, 1]} : vector<8x256xf32> to vector<8x64xf32>
    %143 = vector.extract_strided_slice %141 {offsets = [0, 64], sizes = [8, 64], strides = [1, 1]} : vector<8x256xf32> to vector<8x64xf32>
    %144 = vector.extract_strided_slice %141 {offsets = [0, 128], sizes = [8, 64], strides = [1, 1]} : vector<8x256xf32> to vector<8x64xf32>
    %cst_42 = arith.constant 2.000000e+00 : f32
    %145 = vector.broadcast %cst_42 : f32 to vector<8x64xf32>
    %146 = arith.mulf %145, %144 : vector<8x64xf32>
    %cst_43 = arith.constant 1.000000e+00 : f32
    %147 = vector.broadcast %cst_43 : f32 to vector<8x64xf32>
    %148 = arith.subf %146, %147 : vector<8x64xf32>
    %149 = vector.extract_strided_slice %141 {offsets = [0, 192], sizes = [8, 64], strides = [1, 1]} : vector<8x256xf32> to vector<8x64xf32>
    %150 = arith.mulf %143, %127 : vector<8x64xf32>
    %151 = arith.mulf %142, %148 : vector<8x64xf32>
    %152 = arith.addf %150, %151 : vector<8x64xf32>
    %153 = math.tanh %152 : vector<8x64xf32>
    %154 = arith.mulf %149, %153 : vector<8x64xf32>
    %155 = vector.extract_strided_slice %154 {offsets = [0, 0], sizes = [8, 32], strides = [1, 1]} : vector<8x64xf32> to vector<8x32xf32>
    %c0_44 = arith.constant 0 : index
    %c320 = arith.constant 320 : index
    %156 = vector.load %arg8[%c0_44, %c320] : memref<8x512xf32, #tpu.memory_space<vmem>>, vector<8x32xf32>
    tpu.vector_store %arg8[%c0_44, %c320], %155 {strides = array<i32>} : memref<8x512xf32, #tpu.memory_space<vmem>>, vector<8x32xf32>,
    %157 = vector.extract_strided_slice %154 {offsets = [0, 32], sizes = [8, 32], strides = [1, 1]} : vector<8x64xf32> to vector<8x32xf32>
    %c0_45 = arith.constant 0 : index
    %c160 = arith.constant 160 : index
    %158 = vector.load %arg8[%c0_45, %c160] : memref<8x512xf32, #tpu.memory_space<vmem>>, vector<8x32xf32>
    tpu.vector_store %arg8[%c0_45, %c160], %157 {strides = array<i32>} : memref<8x512xf32, #tpu.memory_space<vmem>>, vector<8x32xf32>,
    %159 = vector.extract_strided_slice %5 {offsets = [0, 1536], sizes = [8, 256], strides = [1, 1]} : vector<8x2048xf32> to vector<8x256xf32>
    %cst_46 = arith.constant dense<0.000000e+00> : vector<8x256xf32>
    %160 = tpu.matmul %154, %6, %cst_46 {dimension_numbers = #tpu.dot_dimension_numbers<[1], [0], [0], [1], [0, 0, 1, 1], [], []>} : vector<8x64xf32>, vector<64x256xf32>, vector<8x256xf32> -> vector<8x256xf32>
    %161 = arith.addf %159, %160 : vector<8x256xf32>
    %162 = arith.negf %161 : vector<8x256xf32>
    %163 = math.exp %162 : vector<8x256xf32>
    %cst_47 = arith.constant 1.000000e+00 : f32
    %164 = vector.broadcast %cst_47 : f32 to vector<8x256xf32>
    %165 = arith.addf %164, %163 : vector<8x256xf32>
    %166 = arith.divf %164, %165 : vector<8x256xf32>
    %167 = vector.extract_strided_slice %166 {offsets = [0, 0], sizes = [8, 64], strides = [1, 1]} : vector<8x256xf32> to vector<8x64xf32>
    %168 = vector.extract_strided_slice %166 {offsets = [0, 64], sizes = [8, 64], strides = [1, 1]} : vector<8x256xf32> to vector<8x64xf32>
    %169 = vector.extract_strided_slice %166 {offsets = [0, 128], sizes = [8, 64], strides = [1, 1]} : vector<8x256xf32> to vector<8x64xf32>
    %cst_48 = arith.constant 2.000000e+00 : f32
    %170 = vector.broadcast %cst_48 : f32 to vector<8x64xf32>
    %171 = arith.mulf %170, %169 : vector<8x64xf32>
    %cst_49 = arith.constant 1.000000e+00 : f32
    %172 = vector.broadcast %cst_49 : f32 to vector<8x64xf32>
    %173 = arith.subf %171, %172 : vector<8x64xf32>
    %174 = vector.extract_strided_slice %166 {offsets = [0, 192], sizes = [8, 64], strides = [1, 1]} : vector<8x256xf32> to vector<8x64xf32>
    %175 = arith.mulf %168, %152 : vector<8x64xf32>
    %176 = arith.mulf %167, %173 : vector<8x64xf32>
    %177 = arith.addf %175, %176 : vector<8x64xf32>
    %178 = math.tanh %177 : vector<8x64xf32>
    %179 = arith.mulf %174, %178 : vector<8x64xf32>
    %180 = vector.extract_strided_slice %179 {offsets = [0, 0], sizes = [8, 32], strides = [1, 1]} : vector<8x64xf32> to vector<8x32xf32>
    %c0_50 = arith.constant 0 : index
    %c384 = arith.constant 384 : index
    %181 = vector.load %arg8[%c0_50, %c384] : memref<8x512xf32, #tpu.memory_space<vmem>>, vector<8x32xf32>
    tpu.vector_store %arg8[%c0_50, %c384], %180 {strides = array<i32>} : memref<8x512xf32, #tpu.memory_space<vmem>>, vector<8x32xf32>,
    %182 = vector.extract_strided_slice %179 {offsets = [0, 32], sizes = [8, 32], strides = [1, 1]} : vector<8x64xf32> to vector<8x32xf32>
    %c0_51 = arith.constant 0 : index
    %c96 = arith.constant 96 : index
    %183 = vector.load %arg8[%c0_51, %c96] : memref<8x512xf32, #tpu.memory_space<vmem>>, vector<8x32xf32>
    tpu.vector_store %arg8[%c0_51, %c96], %182 {strides = array<i32>} : memref<8x512xf32, #tpu.memory_space<vmem>>, vector<8x32xf32>,
    %184 = vector.extract_strided_slice %5 {offsets = [0, 1792], sizes = [8, 256], strides = [1, 1]} : vector<8x2048xf32> to vector<8x256xf32>
    %cst_52 = arith.constant dense<0.000000e+00> : vector<8x256xf32>
    %185 = tpu.matmul %179, %6, %cst_52 {dimension_numbers = #tpu.dot_dimension_numbers<[1], [0], [0], [1], [0, 0, 1, 1], [], []>} : vector<8x64xf32>, vector<64x256xf32>, vector<8x256xf32> -> vector<8x256xf32>
    %186 = arith.addf %184, %185 : vector<8x256xf32>
    %187 = arith.negf %186 : vector<8x256xf32>
    %188 = math.exp %187 : vector<8x256xf32>
    %cst_53 = arith.constant 1.000000e+00 : f32
    %189 = vector.broadcast %cst_53 : f32 to vector<8x256xf32>
    %190 = arith.addf %189, %188 : vector<8x256xf32>
    %191 = arith.divf %189, %190 : vector<8x256xf32>
    %192 = vector.extract_strided_slice %191 {offsets = [0, 0], sizes = [8, 64], strides = [1, 1]} : vector<8x256xf32> to vector<8x64xf32>
    %193 = vector.extract_strided_slice %191 {offsets = [0, 64], sizes = [8, 64], strides = [1, 1]} : vector<8x256xf32> to vector<8x64xf32>
    %194 = vector.extract_strided_slice %191 {offsets = [0, 128], sizes = [8, 64], strides = [1, 1]} : vector<8x256xf32> to vector<8x64xf32>
    %cst_54 = arith.constant 2.000000e+00 : f32
    %195 = vector.broadcast %cst_54 : f32 to vector<8x64xf32>
    %196 = arith.mulf %195, %194 : vector<8x64xf32>
    %cst_55 = arith.constant 1.000000e+00 : f32
    %197 = vector.broadcast %cst_55 : f32 to vector<8x64xf32>
    %198 = arith.subf %196, %197 : vector<8x64xf32>
    %199 = vector.extract_strided_slice %191 {offsets = [0, 192], sizes = [8, 64], strides = [1, 1]} : vector<8x256xf32> to vector<8x64xf32>
    %200 = arith.mulf %193, %177 : vector<8x64xf32>
    %201 = arith.mulf %192, %198 : vector<8x64xf32>
    %202 = arith.addf %200, %201 : vector<8x64xf32>
    %203 = math.tanh %202 : vector<8x64xf32>
    %204 = arith.mulf %199, %203 : vector<8x64xf32>
    %205 = vector.extract_strided_slice %204 {offsets = [0, 0], sizes = [8, 32], strides = [1, 1]} : vector<8x64xf32> to vector<8x32xf32>
    %c0_56 = arith.constant 0 : index
    %c448 = arith.constant 448 : index
    %206 = vector.load %arg8[%c0_56, %c448] : memref<8x512xf32, #tpu.memory_space<vmem>>, vector<8x32xf32>
    tpu.vector_store %arg8[%c0_56, %c448], %205 {strides = array<i32>} : memref<8x512xf32, #tpu.memory_space<vmem>>, vector<8x32xf32>,
    %207 = vector.extract_strided_slice %204 {offsets = [0, 32], sizes = [8, 32], strides = [1, 1]} : vector<8x64xf32> to vector<8x32xf32>
    %c0_57 = arith.constant 0 : index
    %c32 = arith.constant 32 : index
    %208 = vector.load %arg8[%c0_57, %c32] : memref<8x512xf32, #tpu.memory_space<vmem>>, vector<8x32xf32>
    tpu.vector_store %arg8[%c0_57, %c32], %207 {strides = array<i32>} : memref<8x512xf32, #tpu.memory_space<vmem>>, vector<8x32xf32>,
    %c0_58 = arith.constant 0 : index
    %c0_59 = arith.constant 0 : index
    %209 = vector.load %arg5[%c0_58, %c0_59] : memref<64x16xf32, #tpu.memory_space<vmem>>, vector<64x16xf32>
    %c0_60 = arith.constant 0 : index
    %c0_61 = arith.constant 0 : index
    %210 = vector.load %arg6[%c0_60, %c0_61] : memref<1x16xf32, #tpu.memory_space<vmem>>, vector<1x16xf32>
    %c0_62 = arith.constant 0 : index
    %c0_63 = arith.constant 0 : index
    %211 = vector.load %arg8[%c0_62, %c0_63] : memref<8x512xf32, #tpu.memory_space<vmem>>, vector<8x64xf32>
    %cst_64 = arith.constant 0.000000e+00 : f32
    %212 = vector.broadcast %cst_64 : f32 to vector<8x64xf32>
    %213 = arith.maximumf %211, %212 : vector<8x64xf32>
    %cst_65 = arith.constant dense<0.000000e+00> : vector<8x16xf32>
    %214 = tpu.matmul %213, %209, %cst_65 {dimension_numbers = #tpu.dot_dimension_numbers<[1], [0], [0], [1], [0, 0, 1, 1], [], []>} : vector<8x64xf32>, vector<64x16xf32>, vector<8x16xf32> -> vector<8x16xf32>
    %215 = vector.broadcast %210 : vector<1x16xf32> to vector<8x16xf32>
    %216 = arith.addf %214, %215 : vector<8x16xf32>
    %c0_66 = arith.constant 0 : index
    %c0_67 = arith.constant 0 : index
    %217 = vector.load %arg7[%c0_66, %c0_67] : memref<8x128xf32, #tpu.memory_space<vmem>>, vector<8x16xf32>
    tpu.vector_store %arg7[%c0_66, %c0_67], %216 {strides = array<i32>} : memref<8x128xf32, #tpu.memory_space<vmem>>, vector<8x16xf32>,
    %c0_68 = arith.constant 0 : index
    %c64_69 = arith.constant 64 : index
    %218 = vector.load %arg8[%c0_68, %c64_69] : memref<8x512xf32, #tpu.memory_space<vmem>>, vector<8x64xf32>
    %cst_70 = arith.constant 0.000000e+00 : f32
    %219 = vector.broadcast %cst_70 : f32 to vector<8x64xf32>
    %220 = arith.maximumf %218, %219 : vector<8x64xf32>
    %cst_71 = arith.constant dense<0.000000e+00> : vector<8x16xf32>
    %221 = tpu.matmul %220, %209, %cst_71 {dimension_numbers = #tpu.dot_dimension_numbers<[1], [0], [0], [1], [0, 0, 1, 1], [], []>} : vector<8x64xf32>, vector<64x16xf32>, vector<8x16xf32> -> vector<8x16xf32>
    %222 = vector.broadcast %210 : vector<1x16xf32> to vector<8x16xf32>
    %223 = arith.addf %221, %222 : vector<8x16xf32>
    %c0_72 = arith.constant 0 : index
    %c16 = arith.constant 16 : index
    %224 = vector.load %arg7[%c0_72, %c16] : memref<8x128xf32, #tpu.memory_space<vmem>>, vector<8x16xf32>
    tpu.vector_store %arg7[%c0_72, %c16], %223 {strides = array<i32>} : memref<8x128xf32, #tpu.memory_space<vmem>>, vector<8x16xf32>,
    %c0_73 = arith.constant 0 : index
    %c128_74 = arith.constant 128 : index
    %225 = vector.load %arg8[%c0_73, %c128_74] : memref<8x512xf32, #tpu.memory_space<vmem>>, vector<8x64xf32>
    %cst_75 = arith.constant 0.000000e+00 : f32
    %226 = vector.broadcast %cst_75 : f32 to vector<8x64xf32>
    %227 = arith.maximumf %225, %226 : vector<8x64xf32>
    %cst_76 = arith.constant dense<0.000000e+00> : vector<8x16xf32>
    %228 = tpu.matmul %227, %209, %cst_76 {dimension_numbers = #tpu.dot_dimension_numbers<[1], [0], [0], [1], [0, 0, 1, 1], [], []>} : vector<8x64xf32>, vector<64x16xf32>, vector<8x16xf32> -> vector<8x16xf32>
    %229 = vector.broadcast %210 : vector<1x16xf32> to vector<8x16xf32>
    %230 = arith.addf %228, %229 : vector<8x16xf32>
    %c0_77 = arith.constant 0 : index
    %c32_78 = arith.constant 32 : index
    %231 = vector.load %arg7[%c0_77, %c32_78] : memref<8x128xf32, #tpu.memory_space<vmem>>, vector<8x16xf32>
    tpu.vector_store %arg7[%c0_77, %c32_78], %230 {strides = array<i32>} : memref<8x128xf32, #tpu.memory_space<vmem>>, vector<8x16xf32>,
    %c0_79 = arith.constant 0 : index
    %c192_80 = arith.constant 192 : index
    %232 = vector.load %arg8[%c0_79, %c192_80] : memref<8x512xf32, #tpu.memory_space<vmem>>, vector<8x64xf32>
    %cst_81 = arith.constant 0.000000e+00 : f32
    %233 = vector.broadcast %cst_81 : f32 to vector<8x64xf32>
    %234 = arith.maximumf %232, %233 : vector<8x64xf32>
    %cst_82 = arith.constant dense<0.000000e+00> : vector<8x16xf32>
    %235 = tpu.matmul %234, %209, %cst_82 {dimension_numbers = #tpu.dot_dimension_numbers<[1], [0], [0], [1], [0, 0, 1, 1], [], []>} : vector<8x64xf32>, vector<64x16xf32>, vector<8x16xf32> -> vector<8x16xf32>
    %236 = vector.broadcast %210 : vector<1x16xf32> to vector<8x16xf32>
    %237 = arith.addf %235, %236 : vector<8x16xf32>
    %c0_83 = arith.constant 0 : index
    %c48 = arith.constant 48 : index
    %238 = vector.load %arg7[%c0_83, %c48] : memref<8x128xf32, #tpu.memory_space<vmem>>, vector<8x16xf32>
    tpu.vector_store %arg7[%c0_83, %c48], %237 {strides = array<i32>} : memref<8x128xf32, #tpu.memory_space<vmem>>, vector<8x16xf32>,
    %c0_84 = arith.constant 0 : index
    %c256_85 = arith.constant 256 : index
    %239 = vector.load %arg8[%c0_84, %c256_85] : memref<8x512xf32, #tpu.memory_space<vmem>>, vector<8x64xf32>
    %cst_86 = arith.constant 0.000000e+00 : f32
    %240 = vector.broadcast %cst_86 : f32 to vector<8x64xf32>
    %241 = arith.maximumf %239, %240 : vector<8x64xf32>
    %cst_87 = arith.constant dense<0.000000e+00> : vector<8x16xf32>
    %242 = tpu.matmul %241, %209, %cst_87 {dimension_numbers = #tpu.dot_dimension_numbers<[1], [0], [0], [1], [0, 0, 1, 1], [], []>} : vector<8x64xf32>, vector<64x16xf32>, vector<8x16xf32> -> vector<8x16xf32>
    %243 = vector.broadcast %210 : vector<1x16xf32> to vector<8x16xf32>
    %244 = arith.addf %242, %243 : vector<8x16xf32>
    %c0_88 = arith.constant 0 : index
    %c64_89 = arith.constant 64 : index
    %245 = vector.load %arg7[%c0_88, %c64_89] : memref<8x128xf32, #tpu.memory_space<vmem>>, vector<8x16xf32>
    tpu.vector_store %arg7[%c0_88, %c64_89], %244 {strides = array<i32>} : memref<8x128xf32, #tpu.memory_space<vmem>>, vector<8x16xf32>,
    %c0_90 = arith.constant 0 : index
    %c320_91 = arith.constant 320 : index
    %246 = vector.load %arg8[%c0_90, %c320_91] : memref<8x512xf32, #tpu.memory_space<vmem>>, vector<8x64xf32>
    %cst_92 = arith.constant 0.000000e+00 : f32
    %247 = vector.broadcast %cst_92 : f32 to vector<8x64xf32>
    %248 = arith.maximumf %246, %247 : vector<8x64xf32>
    %cst_93 = arith.constant dense<0.000000e+00> : vector<8x16xf32>
    %249 = tpu.matmul %248, %209, %cst_93 {dimension_numbers = #tpu.dot_dimension_numbers<[1], [0], [0], [1], [0, 0, 1, 1], [], []>} : vector<8x64xf32>, vector<64x16xf32>, vector<8x16xf32> -> vector<8x16xf32>
    %250 = vector.broadcast %210 : vector<1x16xf32> to vector<8x16xf32>
    %251 = arith.addf %249, %250 : vector<8x16xf32>
    %c0_94 = arith.constant 0 : index
    %c80 = arith.constant 80 : index
    %252 = vector.load %arg7[%c0_94, %c80] : memref<8x128xf32, #tpu.memory_space<vmem>>, vector<8x16xf32>
    tpu.vector_store %arg7[%c0_94, %c80], %251 {strides = array<i32>} : memref<8x128xf32, #tpu.memory_space<vmem>>, vector<8x16xf32>,
    %c0_95 = arith.constant 0 : index
    %c384_96 = arith.constant 384 : index
    %253 = vector.load %arg8[%c0_95, %c384_96] : memref<8x512xf32, #tpu.memory_space<vmem>>, vector<8x64xf32>
    %cst_97 = arith.constant 0.000000e+00 : f32
    %254 = vector.broadcast %cst_97 : f32 to vector<8x64xf32>
    %255 = arith.maximumf %253, %254 : vector<8x64xf32>
    %cst_98 = arith.constant dense<0.000000e+00> : vector<8x16xf32>
    %256 = tpu.matmul %255, %209, %cst_98 {dimension_numbers = #tpu.dot_dimension_numbers<[1], [0], [0], [1], [0, 0, 1, 1], [], []>} : vector<8x64xf32>, vector<64x16xf32>, vector<8x16xf32> -> vector<8x16xf32>
    %257 = vector.broadcast %210 : vector<1x16xf32> to vector<8x16xf32>
    %258 = arith.addf %256, %257 : vector<8x16xf32>
    %c0_99 = arith.constant 0 : index
    %c96_100 = arith.constant 96 : index
    %259 = vector.load %arg7[%c0_99, %c96_100] : memref<8x128xf32, #tpu.memory_space<vmem>>, vector<8x16xf32>
    tpu.vector_store %arg7[%c0_99, %c96_100], %258 {strides = array<i32>} : memref<8x128xf32, #tpu.memory_space<vmem>>, vector<8x16xf32>,
    %c0_101 = arith.constant 0 : index
    %c448_102 = arith.constant 448 : index
    %260 = vector.load %arg8[%c0_101, %c448_102] : memref<8x512xf32, #tpu.memory_space<vmem>>, vector<8x64xf32>
    %cst_103 = arith.constant 0.000000e+00 : f32
    %261 = vector.broadcast %cst_103 : f32 to vector<8x64xf32>
    %262 = arith.maximumf %260, %261 : vector<8x64xf32>
    %cst_104 = arith.constant dense<0.000000e+00> : vector<8x16xf32>
    %263 = tpu.matmul %262, %209, %cst_104 {dimension_numbers = #tpu.dot_dimension_numbers<[1], [0], [0], [1], [0, 0, 1, 1], [], []>} : vector<8x64xf32>, vector<64x16xf32>, vector<8x16xf32> -> vector<8x16xf32>
    %264 = vector.broadcast %210 : vector<1x16xf32> to vector<8x16xf32>
    %265 = arith.addf %263, %264 : vector<8x16xf32>
    %c0_105 = arith.constant 0 : index
    %c112 = arith.constant 112 : index
    %266 = vector.load %arg7[%c0_105, %c112] : memref<8x128xf32, #tpu.memory_space<vmem>>, vector<8x16xf32>
    tpu.vector_store %arg7[%c0_105, %c112], %265 {strides = array<i32>} : memref<8x128xf32, #tpu.memory_space<vmem>>, vector<8x16xf32>,
    return
  }
  func.func @transform_0(%arg0: i32) -> (i32, i32) {
    %c0_i32 = arith.constant 0 : i32
    %c0_i32_0 = arith.constant 0 : i32
    return %arg0, %c0_i32 : i32, i32
  }
  func.func @transform_1(%arg0: i32) -> (i32, i32) {
    %c0_i32 = arith.constant 0 : i32
    %c0_i32_0 = arith.constant 0 : i32
    %c0_i32_1 = arith.constant 0 : i32
    return %c0_i32, %c0_i32_0 : i32, i32
  }
  func.func @transform_2(%arg0: i32) -> (i32, i32) {
    %c0_i32 = arith.constant 0 : i32
    %c0_i32_0 = arith.constant 0 : i32
    %c0_i32_1 = arith.constant 0 : i32
    return %c0_i32, %c0_i32_0 : i32, i32
  }
  func.func @transform_3(%arg0: i32) -> (i32, i32) {
    %c0_i32 = arith.constant 0 : i32
    %c0_i32_0 = arith.constant 0 : i32
    %c0_i32_1 = arith.constant 0 : i32
    return %c0_i32, %c0_i32_0 : i32, i32
  }
  func.func @transform_4(%arg0: i32) -> (i32, i32) {
    %c0_i32 = arith.constant 0 : i32
    %c0_i32_0 = arith.constant 0 : i32
    %c0_i32_1 = arith.constant 0 : i32
    return %c0_i32, %c0_i32_0 : i32, i32
  }
  func.func @transform_5(%arg0: i32) -> (i32, i32) {
    %c0_i32 = arith.constant 0 : i32
    %c0_i32_0 = arith.constant 0 : i32
    %c0_i32_1 = arith.constant 0 : i32
    return %c0_i32, %c0_i32_0 : i32, i32
  }
  func.func @transform_6(%arg0: i32) -> (i32, i32) {
    %c0_i32 = arith.constant 0 : i32
    %c0_i32_0 = arith.constant 0 : i32
    return %arg0, %c0_i32 : i32, i32
  }
}

</mosaic_0001>

<llo_original>
// kernel: tpu_custom_call.1
$region0: #{tpu_custom_call.1}
  #allocation0 [shape = 'u32[]', space=smem, size = 0x4, offset = 0x4, fixed_abs, tag = 'smem constant byte address 0x4 - core index']
  #allocation1 [shape = 'u32[144,128]{1,0:T(1,128)}', space=vmem, size = 0x12000, scoped, tag = 'internal scratch']
  #allocation2 [shape = 'f32[8,512]{1,0:T(8,128)}', space=vmem, size = 0x4000, scoped, tag = 'scratch operand']
  %s0 = inlined_call_operand.vmem [shape: f32[8,16], index: 0, kind: input, shape index: {}]
  %s1 = inlined_call_operand.hbm [shape: f32[16,2048], index: 1, kind: input, shape index: {}]
  %s2 = inlined_call_operand.vmem [shape: f32[1,2048], index: 2, kind: input, shape index: {}]
  %s3 = inlined_call_operand.hbm [shape: f32[64,256], index: 3, kind: input, shape index: {}]
  %s4 = inlined_call_operand.vmem [shape: f32[64,16], index: 4, kind: input, shape index: {}]
  %s5 = inlined_call_operand.vmem [shape: f32[1,16], index: 5, kind: input, shape index: {}]
  %s6 = inlined_call_operand.hbm [shape: f32[8,128], index: 6, kind: output, shape index: {}]
  %s7 = sld [smem:[#allocation0]]
  $region42: #{tpu_custom_call.1} parent=0
    _
  %s9 = ssub.s32 1, %s7
  %s10 = scalar_select 0, %s9, %s7
  $region1: #{tpu_custom_call.1} parent=0
    #allocation3 [shape = 'u8[131072]{0}', space=vmem, size = 0x20000, scoped, tag = 'input window, operand 1, single buffered']
    #allocation4 [shape = 's32[1]{0}', space=sflag, size = 0x4, scoped, tag = 'scoped memory for tpu_custom_call.1']
    #allocation5 [shape = 's32[1]{0}', space=sflag, size = 0x4, scoped, tag = 'scoped memory for tpu_custom_call.1']
    #allocation6 [shape = 'u8[65536]{0}', space=vmem, size = 0x10000, scoped, tag = 'input window, operand 3, single buffered']
    #allocation7 [shape = 's32[1]{0}', space=sflag, size = 0x4, scoped, tag = 'scoped memory for tpu_custom_call.1']
    #allocation8 [shape = 'u8[4096]{0}', space=vmem, size = 0x1000, scoped, tag = 'output window, operand 0, single buffered']
    %11 = vsyncpa [#allocation4], 0
    %12 = vsyncpa [#allocation7], 0
    %13 = vsyncpa [#allocation5], 0
    // Predicated region
    $region2: #{tpu_custom_call.1} parent=1 // pred_check
      _
    $region3: #{tpu_custom_call.1} parent=1 // pred_check_branch
      %15 = sbr.rel (0) target = $region5
    $region4: #{tpu_custom_call.1} parent=1 // pred_region
      _
    $region5: #{tpu_custom_call.1} parent=1 // pred_fallthru
      _
    // Predicated region
    $region6: #{tpu_custom_call.1} parent=1 // pred_check
      _
    $region7: #{tpu_custom_call.1} parent=1 // pred_check_branch
      %17 = sbr.rel (0) target = $region9
    $region8: #{tpu_custom_call.1} parent=1 // pred_region
      %s19 = ssub.s32 4096, 4096
      %20 = vsyncadd [#allocation4], %s19
      %s21 = sshll.u32 [#allocation3], 4
      %s22 = int_to_ptr.vmem [resolvable:$true] %s21
      %27 = dma.hbm_to_vmem [thread:$0]  %s1, 4096, %s22, [#allocation4], 2048, 2048, 128
    $region9: #{tpu_custom_call.1} parent=1 // pred_fallthru
      _
    // Predicated region
    $region10: #{tpu_custom_call.1} parent=1 // pred_check
      _
    $region11: #{tpu_custom_call.1} parent=1 // pred_check_branch
      %29 = sbr.rel (0) target = $region13
    $region12: #{tpu_custom_call.1} parent=1 // pred_region
      _
    $region13: #{tpu_custom_call.1} parent=1 // pred_fallthru
      _
    // Predicated region
    $region14: #{tpu_custom_call.1} parent=1 // pred_check
      _
    $region15: #{tpu_custom_call.1} parent=1 // pred_check_branch
      %31 = sbr.rel (0) target = $region17
    $region16: #{tpu_custom_call.1} parent=1 // pred_region
      %s33 = ssub.s32 2048, 2048
      %34 = vsyncadd [#allocation7], %s33
      %s35 = sshll.u32 [#allocation6], 4
      %s36 = int_to_ptr.vmem [resolvable:$true] %s35
      %41 = dma.hbm_to_vmem [thread:$0]  %s3, 2048, %s36, [#allocation7], 256, 256, 16
    $region17: #{tpu_custom_call.1} parent=1 // pred_fallthru
      _
    // Predicated region
    $region18: #{tpu_custom_call.1} parent=1 // pred_check
      _
    $region19: #{tpu_custom_call.1} parent=1 // pred_check_branch
      %43 = sbr.rel (0) target = $region21
    $region20: #{tpu_custom_call.1} parent=1 // pred_region
      _
    $region21: #{tpu_custom_call.1} parent=1 // pred_fallthru
      _
    // Predicated region
    $region22: #{tpu_custom_call.1} parent=1 // pred_check
      _
    $region23: #{tpu_custom_call.1} parent=1 // pred_check_branch
      %45 = sbr.rel (0) target = $region25
    $region24: #{tpu_custom_call.1} parent=1 // pred_region
      _
    $region25: #{tpu_custom_call.1} parent=1 // pred_fallthru
      _
    // Predicated region
    $region26: #{tpu_custom_call.1} parent=1 // pred_check
      _
    $region27: #{tpu_custom_call.1} parent=1 // pred_check_branch
      %47 = sbr.rel (0) target = $region29
    $region28: #{tpu_custom_call.1} parent=1 // pred_region
      %48 = dma.done [#allocation4], 4096
    $region29: #{tpu_custom_call.1} parent=1 // pred_fallthru
      _
    // Predicated region
    $region30: #{tpu_custom_call.1} parent=1 // pred_check
      _
    $region31: #{tpu_custom_call.1} parent=1 // pred_check_branch
      %50 = sbr.rel (0) target = $region33
    $region32: #{tpu_custom_call.1} parent=1 // pred_region
      %51 = dma.done [#allocation7], 2048
    $region33: #{tpu_custom_call.1} parent=1 // pred_fallthru
      _
    %v52 = vld [vmem:[%s0] sm:$0xff]
    %v53 = vld [vmem:[#allocation3] sm:$0xff]
    %v54 = vld [vmem:[#allocation3 + $0x8] sm:$0xff]
    %v55 = vld [vmem:[#allocation3 + $0x10] sm:$0xff]
    %v56 = vld [vmem:[#allocation3 + $0x18] sm:$0xff]
    %v57 = vld [vmem:[#allocation3 + $0x20] sm:$0xff]
    %v58 = vld [vmem:[#allocation3 + $0x28] sm:$0xff]
    %v59 = vld [vmem:[#allocation3 + $0x30] sm:$0xff]
    %v60 = vld [vmem:[#allocation3 + $0x38] sm:$0xff]
    %v61 = vld [vmem:[#allocation3 + $0x40] sm:$0xff]
    %v62 = vld [vmem:[#allocation3 + $0x48] sm:$0xff]
    %v63 = vld [vmem:[#allocation3 + $0x50] sm:$0xff]
    %v64 = vld [vmem:[#allocation3 + $0x58] sm:$0xff]
    %v65 = vld [vmem:[#allocation3 + $0x60] sm:$0xff]
    %v66 = vld [vmem:[#allocation3 + $0x68] sm:$0xff]
    %v67 = vld [vmem:[#allocation3 + $0x70] sm:$0xff]
    %v68 = vld [vmem:[#allocation3 + $0x78] sm:$0xff]
    %v69 = vld [vmem:[#allocation3 + $0x80] sm:$0xff]
    %v70 = vld [vmem:[#allocation3 + $0x88] sm:$0xff]
    %v71 = vld [vmem:[#allocation3 + $0x90] sm:$0xff]
    %v72 = vld [vmem:[#allocation3 + $0x98] sm:$0xff]
    %v73 = vld [vmem:[#allocation3 + $0xa0] sm:$0xff]
    %v74 = vld [vmem:[#allocation3 + $0xa8] sm:$0xff]
    %v75 = vld [vmem:[#allocation3 + $0xb0] sm:$0xff]
    %v76 = vld [vmem:[#allocation3 + $0xb8] sm:$0xff]
    %v77 = vld [vmem:[#allocation3 + $0xc0] sm:$0xff]
    %v78 = vld [vmem:[#allocation3 + $0xc8] sm:$0xff]
    %v79 = vld [vmem:[#allocation3 + $0xd0] sm:$0xff]
    %v80 = vld [vmem:[#allocation3 + $0xd8] sm:$0xff]
    %v81 = vld [vmem:[#allocation3 + $0xe0] sm:$0xff]
    %v82 = vld [vmem:[#allocation3 + $0xe8] sm:$0xff]
    %v83 = vld [vmem:[#allocation3 + $0xf0] sm:$0xff]
    %v84 = vld [vmem:[#allocation3 + $0xf8] sm:$0xff]
    %v85 = vld [vmem:[%s2] sm:$0xff]
    %v86 = vld [vmem:[%s2 + $0x8] sm:$0xff]
    %v89 = vlaneseq
    %v90 = vshrl.u32 %v89, 7
    %v91 = vsub.s32 0, %v90
    %v92 = vrot.slane %v85, %v91
    %v93 = vlaneseq
    %v94 = vshrl.u32 %v93, 7
    %v95 = vsub.s32 1, %v94
    %v96 = vrot.slane %v85, %v95
    %v97 = vlaneseq
    %v98 = vshrl.u32 %v97, 7
    %v99 = vsub.s32 2, %v98
    %v100 = vrot.slane %v85, %v99
    %v101 = vlaneseq
    %v102 = vshrl.u32 %v101, 7
    %v103 = vsub.s32 3, %v102
    %v104 = vrot.slane %v85, %v103
    %v105 = vlaneseq
    %v106 = vshrl.u32 %v105, 7
    %v107 = vsub.s32 4, %v106
    %v108 = vrot.slane %v85, %v107
    %v109 = vlaneseq
    %v110 = vshrl.u32 %v109, 7
    %v111 = vsub.s32 5, %v110
    %v112 = vrot.slane %v85, %v111
    %v113 = vlaneseq
    %v114 = vshrl.u32 %v113, 7
    %v115 = vsub.s32 6, %v114
    %v116 = vrot.slane %v85, %v115
    %v117 = vlaneseq
    %v118 = vshrl.u32 %v117, 7
    %v119 = vsub.s32 7, %v118
    %v120 = vrot.slane %v85, %v119
    %v121 = vlaneseq
    %v122 = vshrl.u32 %v121, 7
    %v123 = vsub.s32 0, %v122
    %v124 = vrot.slane %v86, %v123
    %v125 = vlaneseq
    %v126 = vshrl.u32 %v125, 7
    %v127 = vsub.s32 1, %v126
    %v128 = vrot.slane %v86, %v127
    %v129 = vlaneseq
    %v130 = vshrl.u32 %v129, 7
    %v131 = vsub.s32 2, %v130
    %v132 = vrot.slane %v86, %v131
    %v133 = vlaneseq
    %v134 = vshrl.u32 %v133, 7
    %v135 = vsub.s32 3, %v134
    %v136 = vrot.slane %v86, %v135
    %v137 = vlaneseq
    %v138 = vshrl.u32 %v137, 7
    %v139 = vsub.s32 4, %v138
    %v140 = vrot.slane %v86, %v139
    %v141 = vlaneseq
    %v142 = vshrl.u32 %v141, 7
    %v143 = vsub.s32 5, %v142
    %v144 = vrot.slane %v86, %v143
    %v145 = vlaneseq
    %v146 = vshrl.u32 %v145, 7
    %v147 = vsub.s32 6, %v146
    %v148 = vrot.slane %v86, %v147
    %v149 = vlaneseq
    %v150 = vshrl.u32 %v149, 7
    %v151 = vsub.s32 7, %v150
    %v152 = vrot.slane %v86, %v151
    %vm169 = vcmask 130048
    %v171 = vsel %vm169, %v52, 0
    %173 = vmatprep.subr.mxu0 %v54
    %174 = vmatpush1.msra.mxu0 %v53
    %175 = vmatprep.subr.mxu0 %v70
    %176 = vmatpush1.msra.mxu0 %v69
    %177 = vmatprep.subr.mxu0 0.0
    %178 = vmatpush1.msra.mxu0 0.0
    %179 = vmatprep.subr.mxu0 0.0
    %180 = vmatpush1.msra.mxu0 0.0
    %181 = vmatprep.subr.mxu0 0.0
    %182 = vmatpush1.msra.mxu0 0.0
    %183 = vmatprep.subr.mxu0 0.0
    %184 = vmatpush1.msra.mxu0 0.0
    %185 = vmatprep.subr.mxu0 0.0
    %186 = vmatpush1.msra.mxu0 0.0
    %187 = vmatprep.subr.mxu0 0.0
    %188 = vmatpush1.msra.mxu0 0.0
    %189 = vmatprep.subr.mxu0 0.0
    %190 = vmatpush1.msra.mxu0 0.0
    %191 = vmatprep.subr.mxu0 0.0
    %192 = vmatpush1.msra.mxu0 0.0
    %193 = vmatprep.subr.mxu0 0.0
    %194 = vmatpush1.msra.mxu0 0.0
    %195 = vmatprep.subr.mxu0 0.0
    %196 = vmatpush1.msra.mxu0 0.0
    %197 = vmatprep.subr.mxu0 0.0
    %198 = vmatpush1.msra.mxu0 0.0
    %199 = vmatprep.subr.mxu0 0.0
    %200 = vmatpush1.msra.mxu0 0.0
    %201 = vmatprep.subr.mxu0 0.0
    %202 = vmatpush1.msra.mxu0 0.0
    %203 = vmatprep.subr.mxu0 0.0
    %204 = vmatpush1.msra.mxu0 0.0
    %205 = vmatprep.subr.mxu0 0.0
    %206 = vmatpush1.msra.mxu0 0.0
    %207 = vmatprep.subr.mxu0 0.0
    %208 = vmatpush1.msra.mxu0 0.0
    %209 = vmatprep.subr.mxu0 0.0
    %210 = vmatpush1.msra.mxu0 0.0
    %211 = vmatprep.subr.mxu0 0.0
    %212 = vmatpush1.msra.mxu0 0.0
    %213 = vmatprep.subr.mxu0 0.0
    %214 = vmatpush1.msra.mxu0 0.0
    %215 = vmatprep.subr.mxu0 0.0
    %216 = vmatpush1.msra.mxu0 0.0
    %217 = vmatprep.subr.mxu0 0.0
    %218 = vmatpush1.msra.mxu0 0.0
    %219 = vmatprep.subr.mxu0 0.0
    %220 = vmatpush1.msra.mxu0 0.0
    %221 = vmatprep.subr.mxu0 0.0
    %222 = vmatpush1.msra.mxu0 0.0
    %223 = vmatprep.subr.mxu0 0.0
    %224 = vmatpush1.msra.mxu0 0.0
    %225 = vmatprep.subr.mxu0 0.0
    %226 = vmatpush1.msra.mxu0 0.0
    %227 = vmatprep.subr.mxu0 0.0
    %228 = vmatpush1.msra.mxu0 0.0
    %229 = vmatprep.subr.mxu0 0.0
    %230 = vmatpush1.msra.mxu0 0.0
    %231 = vmatprep.subr.mxu0 0.0
    %232 = vmatpush1.msra.mxu0 0.0
    %233 = vmatprep.subr.mxu0 0.0
    %234 = vmatpush1.msra.mxu0 0.0
    %235 = vmatprep.subr.mxu0 0.0
    %236 = vmatpush1.msra.mxu0 0.0
    %237 = vmatprep.mubr.f32.mxu0 0.0
    %238 = vmatmul.mubr.f32.gmra.mrb[0].mxu0 %v171
    %v239 = vpop.f32.mrb[0].mxu0
    %v240 = vadd.f32 %v92, %v239
    %v241 = vpop.f32.mrb[0].mxu0
    %v242 = vadd.f32 %v96, %v241
    %243 = vdwg.mxu0
    %244 = vmatprep.subr.mxu0 %v56
    %245 = vmatpush1.msra.mxu0 %v55
    %246 = vmatprep.subr.mxu0 %v72
    %247 = vmatpush1.msra.mxu0 %v71
    %248 = vmatprep.subr.mxu0 0.0
    %249 = vmatpush1.msra.mxu0 0.0
    %250 = vmatprep.subr.mxu0 0.0
    %251 = vmatpush1.msra.mxu0 0.0
    %252 = vmatprep.subr.mxu0 0.0
    %253 = vmatpush1.msra.mxu0 0.0
    %254 = vmatprep.subr.mxu0 0.0
    %255 = vmatpush1.msra.mxu0 0.0
    %256 = vmatprep.subr.mxu0 0.0
    %257 = vmatpush1.msra.mxu0 0.0
    %258 = vmatprep.subr.mxu0 0.0
    %259 = vmatpush1.msra.mxu0 0.0
    %260 = vmatprep.subr.mxu0 0.0
    %261 = vmatpush1.msra.mxu0 0.0
    %262 = vmatprep.subr.mxu0 0.0
    %263 = vmatpush1.msra.mxu0 0.0
    %264 = vmatprep.subr.mxu0 0.0
    %265 = vmatpush1.msra.mxu0 0.0
    %266 = vmatprep.subr.mxu0 0.0
    %267 = vmatpush1.msra.mxu0 0.0
    %268 = vmatprep.subr.mxu0 0.0
    %269 = vmatpush1.msra.mxu0 0.0
    %270 = vmatprep.subr.mxu0 0.0
    %271 = vmatpush1.msra.mxu0 0.0
    %272 = vmatprep.subr.mxu0 0.0
    %273 = vmatpush1.msra.mxu0 0.0
    %274 = vmatprep.subr.mxu0 0.0
    %275 = vmatpush1.msra.mxu0 0.0
    %276 = vmatprep.subr.mxu0 0.0
    %277 = vmatpush1.msra.mxu0 0.0
    %278 = vmatprep.subr.mxu0 0.0
    %279 = vmatpush1.msra.mxu0 0.0
    %280 = vmatprep.subr.mxu0 0.0
    %281 = vmatpush1.msra.mxu0 0.0
    %282 = vmatprep.subr.mxu0 0.0
    %283 = vmatpush1.msra.mxu0 0.0
    %284 = vmatprep.subr.mxu0 0.0
    %285 = vmatpush1.msra.mxu0 0.0
    %286 = vmatprep.subr.mxu0 0.0
    %287 = vmatpush1.msra.mxu0 0.0
    %288 = vmatprep.subr.mxu0 0.0
    %289 = vmatpush1.msra.mxu0 0.0
    %290 = vmatprep.subr.mxu0 0.0
    %291 = vmatpush1.msra.mxu0 0.0
    %292 = vmatprep.subr.mxu0 0.0
    %293 = vmatpush1.msra.mxu0 0.0
    %294 = vmatprep.subr.mxu0 0.0
    %295 = vmatpush1.msra.mxu0 0.0
    %296 = vmatprep.subr.mxu0 0.0
    %297 = vmatpush1.msra.mxu0 0.0
    %298 = vmatprep.subr.mxu0 0.0
    %299 = vmatpush1.msra.mxu0 0.0
    %300 = vmatprep.subr.mxu0 0.0
    %301 = vmatpush1.msra.mxu0 0.0
    %302 = vmatprep.subr.mxu0 0.0
    %303 = vmatpush1.msra.mxu0 0.0
    %304 = vmatprep.subr.mxu0 0.0
    %305 = vmatpush1.msra.mxu0 0.0
    %306 = vmatprep.subr.mxu0 0.0
    %307 = vmatpush1.msra.mxu0 0.0
    %308 = vmatprep.mubr.f32.mxu0 0.0
    %309 = vmatmul.mubr.f32.gmra.mrb[0].mxu0 %v171
    %v310 = vpop.f32.mrb[0].mxu0
    %v311 = vadd.f32 %v100, %v310
    %v312 = vpop.f32.mrb[0].mxu0
    %v313 = vadd.f32 %v104, %v312
    %314 = vdwg.mxu0
    %315 = vmatprep.subr.mxu0 %v58
    %316 = vmatpush1.msra.mxu0 %v57
    %317 = vmatprep.subr.mxu0 %v74
    %318 = vmatpush1.msra.mxu0 %v73
    %319 = vmatprep.subr.mxu0 0.0
    %320 = vmatpush1.msra.mxu0 0.0
    %321 = vmatprep.subr.mxu0 0.0
    %322 = vmatpush1.msra.mxu0 0.0
    %323 = vmatprep.subr.mxu0 0.0
    %324 = vmatpush1.msra.mxu0 0.0
    %325 = vmatprep.subr.mxu0 0.0
    %326 = vmatpush1.msra.mxu0 0.0
    %327 = vmatprep.subr.mxu0 0.0
    %328 = vmatpush1.msra.mxu0 0.0
    %329 = vmatprep.subr.mxu0 0.0
    %330 = vmatpush1.msra.mxu0 0.0
    %331 = vmatprep.subr.mxu0 0.0
    %332 = vmatpush1.msra.mxu0 0.0
    %333 = vmatprep.subr.mxu0 0.0
    %334 = vmatpush1.msra.mxu0 0.0
    %335 = vmatprep.subr.mxu0 0.0
    %336 = vmatpush1.msra.mxu0 0.0
    %337 = vmatprep.subr.mxu0 0.0
    %338 = vmatpush1.msra.mxu0 0.0
    %339 = vmatprep.subr.mxu0 0.0
    %340 = vmatpush1.msra.mxu0 0.0
    %341 = vmatprep.subr.mxu0 0.0
    %342 = vmatpush1.msra.mxu0 0.0
    %343 = vmatprep.subr.mxu0 0.0
    %344 = vmatpush1.msra.mxu0 0.0
    %345 = vmatprep.subr.mxu0 0.0
    %346 = vmatpush1.msra.mxu0 0.0
    %347 = vmatprep.subr.mxu0 0.0
    %348 = vmatpush1.msra.mxu0 0.0
    %349 = vmatprep.subr.mxu0 0.0
    %350 = vmatpush1.msra.mxu0 0.0
    %351 = vmatprep.subr.mxu0 0.0
    %352 = vmatpush1.msra.mxu0 0.0
    %353 = vmatprep.subr.mxu0 0.0
    %354 = vmatpush1.msra.mxu0 0.0
    %355 = vmatprep.subr.mxu0 0.0
    %356 = vmatpush1.msra.mxu0 0.0
    %357 = vmatprep.subr.mxu0 0.0
    %358 = vmatpush1.msra.mxu0 0.0
    %359 = vmatprep.subr.mxu0 0.0
    %360 = vmatpush1.msra.mxu0 0.0
    %361 = vmatprep.subr.mxu0 0.0
    %362 = vmatpush1.msra.mxu0 0.0
    %363 = vmatprep.subr.mxu0 0.0
    %364 = vmatpush1.msra.mxu0 0.0
    %365 = vmatprep.subr.mxu0 0.0
    %366 = vmatpush1.msra.mxu0 0.0
    %367 = vmatprep.subr.mxu0 0.0
    %368 = vmatpush1.msra.mxu0 0.0
    %369 = vmatprep.subr.mxu0 0.0
    %370 = vmatpush1.msra.mxu0 0.0
    %371 = vmatprep.subr.mxu0 0.0
    %372 = vmatpush1.msra.mxu0 0.0
    %373 = vmatprep.subr.mxu0 0.0
    %374 = vmatpush1.msra.mxu0 0.0
    %375 = vmatprep.subr.mxu0 0.0
    %376 = vmatpush1.msra.mxu0 0.0
    %377 = vmatprep.subr.mxu0 0.0
    %378 = vmatpush1.msra.mxu0 0.0
    %379 = vmatprep.mubr.f32.mxu0 0.0
    %380 = vmatmul.mubr.f32.gmra.mrb[0].mxu0 %v171
    %v381 = vpop.f32.mrb[0].mxu0
    %v382 = vadd.f32 %v108, %v381
    %v383 = vpop.f32.mrb[0].mxu0
    %v384 = vadd.f32 %v112, %v383
    %385 = vdwg.mxu0
    %386 = vmatprep.subr.mxu0 %v60
    %387 = vmatpush1.msra.mxu0 %v59
    %388 = vmatprep.subr.mxu0 %v76
    %389 = vmatpush1.msra.mxu0 %v75
    %390 = vmatprep.subr.mxu0 0.0
    %391 = vmatpush1.msra.mxu0 0.0
    %392 = vmatprep.subr.mxu0 0.0
    %393 = vmatpush1.msra.mxu0 0.0
    %394 = vmatprep.subr.mxu0 0.0
    %395 = vmatpush1.msra.mxu0 0.0
    %396 = vmatprep.subr.mxu0 0.0
    %397 = vmatpush1.msra.mxu0 0.0
    %398 = vmatprep.subr.mxu0 0.0
    %399 = vmatpush1.msra.mxu0 0.0
    %400 = vmatprep.subr.mxu0 0.0
    %401 = vmatpush1.msra.mxu0 0.0
    %402 = vmatprep.subr.mxu0 0.0
    %403 = vmatpush1.msra.mxu0 0.0
    %404 = vmatprep.subr.mxu0 0.0
    %405 = vmatpush1.msra.mxu0 0.0
    %406 = vmatprep.subr.mxu0 0.0
    %407 = vmatpush1.msra.mxu0 0.0
    %408 = vmatprep.subr.mxu0 0.0
    %409 = vmatpush1.msra.mxu0 0.0
    %410 = vmatprep.subr.mxu0 0.0
    %411 = vmatpush1.msra.mxu0 0.0
    %412 = vmatprep.subr.mxu0 0.0
    %413 = vmatpush1.msra.mxu0 0.0
    %414 = vmatprep.subr.mxu0 0.0
    %415 = vmatpush1.msra.mxu0 0.0
    %416 = vmatprep.subr.mxu0 0.0
    %417 = vmatpush1.msra.mxu0 0.0
    %418 = vmatprep.subr.mxu0 0.0
    %419 = vmatpush1.msra.mxu0 0.0
    %420 = vmatprep.subr.mxu0 0.0
    %421 = vmatpush1.msra.mxu0 0.0
    %422 = vmatprep.subr.mxu0 0.0
    %423 = vmatpush1.msra.mxu0 0.0
    %424 = vmatprep.subr.mxu0 0.0
    %425 = vmatpush1.msra.mxu0 0.0
    %426 = vmatprep.subr.mxu0 0.0
    %427 = vmatpush1.msra.mxu0 0.0
    %428 = vmatprep.subr.mxu0 0.0
    %429 = vmatpush1.msra.mxu0 0.0
    %430 = vmatprep.subr.mxu0 0.0
    %431 = vmatpush1.msra.mxu0 0.0
    %432 = vmatprep.subr.mxu0 0.0
    %433 = vmatpush1.msra.mxu0 0.0
    %434 = vmatprep.subr.mxu0 0.0
    %435 = vmatpush1.msra.mxu0 0.0
    %436 = vmatprep.subr.mxu0 0.0
    %437 = vmatpush1.msra.mxu0 0.0
    %438 = vmatprep.subr.mxu0 0.0
    %439 = vmatpush1.msra.mxu0 0.0
    %440 = vmatprep.subr.mxu0 0.0
    %441 = vmatpush1.msra.mxu0 0.0
    %442 = vmatprep.subr.mxu0 0.0
    %443 = vmatpush1.msra.mxu0 0.0
    %444 = vmatprep.subr.mxu0 0.0
    %445 = vmatpush1.msra.mxu0 0.0
    %446 = vmatprep.subr.mxu0 0.0
    %447 = vmatpush1.msra.mxu0 0.0
    %448 = vmatprep.subr.mxu0 0.0
    %449 = vmatpush1.msra.mxu0 0.0
    %450 = vmatprep.mubr.f32.mxu0 0.0
    %451 = vmatmul.mubr.f32.gmra.mrb[0].mxu0 %v171
    %v452 = vpop.f32.mrb[0].mxu0
    %v453 = vadd.f32 %v116, %v452
    %v454 = vpop.f32.mrb[0].mxu0
    %v455 = vadd.f32 %v120, %v454
    %456 = vdwg.mxu0
    %457 = vmatprep.subr.mxu0 %v62
    %458 = vmatpush1.msra.mxu0 %v61
    %459 = vmatprep.subr.mxu0 %v78
    %460 = vmatpush1.msra.mxu0 %v77
    %461 = vmatprep.subr.mxu0 0.0
    %462 = vmatpush1.msra.mxu0 0.0
    %463 = vmatprep.subr.mxu0 0.0
    %464 = vmatpush1.msra.mxu0 0.0
    %465 = vmatprep.subr.mxu0 0.0
    %466 = vmatpush1.msra.mxu0 0.0
    %467 = vmatprep.subr.mxu0 0.0
    %468 = vmatpush1.msra.mxu0 0.0
    %469 = vmatprep.subr.mxu0 0.0
    %470 = vmatpush1.msra.mxu0 0.0
    %471 = vmatprep.subr.mxu0 0.0
    %472 = vmatpush1.msra.mxu0 0.0
    %473 = vmatprep.subr.mxu0 0.0
    %474 = vmatpush1.msra.mxu0 0.0
    %475 = vmatprep.subr.mxu0 0.0
    %476 = vmatpush1.msra.mxu0 0.0
    %477 = vmatprep.subr.mxu0 0.0
    %478 = vmatpush1.msra.mxu0 0.0
    %479 = vmatprep.subr.mxu0 0.0
    %480 = vmatpush1.msra.mxu0 0.0
    %481 = vmatprep.subr.mxu0 0.0
    %482 = vmatpush1.msra.mxu0 0.0
    %483 = vmatprep.subr.mxu0 0.0
    %484 = vmatpush1.msra.mxu0 0.0
    %485 = vmatprep.subr.mxu0 0.0
    %486 = vmatpush1.msra.mxu0 0.0
    %487 = vmatprep.subr.mxu0 0.0
    %488 = vmatpush1.msra.mxu0 0.0
    %489 = vmatprep.subr.mxu0 0.0
    %490 = vmatpush1.msra.mxu0 0.0
    %491 = vmatprep.subr.mxu0 0.0
    %492 = vmatpush1.msra.mxu0 0.0
    %493 = vmatprep.subr.mxu0 0.0
    %494 = vmatpush1.msra.mxu0 0.0
    %495 = vmatprep.subr.mxu0 0.0
    %496 = vmatpush1.msra.mxu0 0.0
    %497 = vmatprep.subr.mxu0 0.0
    %498 = vmatpush1.msra.mxu0 0.0
    %499 = vmatprep.subr.mxu0 0.0
    %500 = vmatpush1.msra.mxu0 0.0
    %501 = vmatprep.subr.mxu0 0.0
    %502 = vmatpush1.msra.mxu0 0.0
    %503 = vmatprep.subr.mxu0 0.0
    %504 = vmatpush1.msra.mxu0 0.0
    %505 = vmatprep.subr.mxu0 0.0
    %506 = vmatpush1.msra.mxu0 0.0
    %507 = vmatprep.subr.mxu0 0.0
    %508 = vmatpush1.msra.mxu0 0.0
    %509 = vmatprep.subr.mxu0 0.0
    %510 = vmatpush1.msra.mxu0 0.0
    %511 = vmatprep.subr.mxu0 0.0
    %512 = vmatpush1.msra.mxu0 0.0
    %513 = vmatprep.subr.mxu0 0.0
    %514 = vmatpush1.msra.mxu0 0.0
    %515 = vmatprep.subr.mxu0 0.0
    %516 = vmatpush1.msra.mxu0 0.0
    %517 = vmatprep.subr.mxu0 0.0
    %518 = vmatpush1.msra.mxu0 0.0
    %519 = vmatprep.subr.mxu0 0.0
    %520 = vmatpush1.msra.mxu0 0.0
    %521 = vmatprep.mubr.f32.mxu0 0.0
    %522 = vmatmul.mubr.f32.gmra.mrb[0].mxu0 %v171
    %v523 = vpop.f32.mrb[0].mxu0
    %v524 = vadd.f32 %v124, %v523
    %v525 = vpop.f32.mrb[0].mxu0
    %v526 = vadd.f32 %v128, %v525
    %527 = vdwg.mxu0
    %528 = vmatprep.subr.mxu0 %v64
    %529 = vmatpush1.msra.mxu0 %v63
    %530 = vmatprep.subr.mxu0 %v80
    %531 = vmatpush1.msra.mxu0 %v79
    %532 = vmatprep.subr.mxu0 0.0
    %533 = vmatpush1.msra.mxu0 0.0
    %534 = vmatprep.subr.mxu0 0.0
    %535 = vmatpush1.msra.mxu0 0.0
    %536 = vmatprep.subr.mxu0 0.0
    %537 = vmatpush1.msra.mxu0 0.0
    %538 = vmatprep.subr.mxu0 0.0
    %539 = vmatpush1.msra.mxu0 0.0
    %540 = vmatprep.subr.mxu0 0.0
    %541 = vmatpush1.msra.mxu0 0.0
    %542 = vmatprep.subr.mxu0 0.0
    %543 = vmatpush1.msra.mxu0 0.0
    %544 = vmatprep.subr.mxu0 0.0
    %545 = vmatpush1.msra.mxu0 0.0
    %546 = vmatprep.subr.mxu0 0.0
    %547 = vmatpush1.msra.mxu0 0.0
    %548 = vmatprep.subr.mxu0 0.0
    %549 = vmatpush1.msra.mxu0 0.0
    %550 = vmatprep.subr.mxu0 0.0
    %551 = vmatpush1.msra.mxu0 0.0
    %552 = vmatprep.subr.mxu0 0.0
    %553 = vmatpush1.msra.mxu0 0.0
    %554 = vmatprep.subr.mxu0 0.0
    %555 = vmatpush1.msra.mxu0 0.0
    %556 = vmatprep.subr.mxu0 0.0
    %557 = vmatpush1.msra.mxu0 0.0
    %558 = vmatprep.subr.mxu0 0.0
    %559 = vmatpush1.msra.mxu0 0.0
    %560 = vmatprep.subr.mxu0 0.0
    %561 = vmatpush1.msra.mxu0 0.0
    %562 = vmatprep.subr.mxu0 0.0
    %563 = vmatpush1.msra.mxu0 0.0
    %564 = vmatprep.subr.mxu0 0.0
    %565 = vmatpush1.msra.mxu0 0.0
    %566 = vmatprep.subr.mxu0 0.0
    %567 = vmatpush1.msra.mxu0 0.0
    %568 = vmatprep.subr.mxu0 0.0
    %569 = vmatpush1.msra.mxu0 0.0
    %570 = vmatprep.subr.mxu0 0.0
    %571 = vmatpush1.msra.mxu0 0.0
    %572 = vmatprep.subr.mxu0 0.0
    %573 = vmatpush1.msra.mxu0 0.0
    %574 = vmatprep.subr.mxu0 0.0
    %575 = vmatpush1.msra.mxu0 0.0
    %576 = vmatprep.subr.mxu0 0.0
    %577 = vmatpush1.msra.mxu0 0.0
    %578 = vmatprep.subr.mxu0 0.0
    %579 = vmatpush1.msra.mxu0 0.0
    %580 = vmatprep.subr.mxu0 0.0
    %581 = vmatpush1.msra.mxu0 0.0
    %582 = vmatprep.subr.mxu0 0.0
    %583 = vmatpush1.msra.mxu0 0.0
    %584 = vmatprep.subr.mxu0 0.0
    %585 = vmatpush1.msra.mxu0 0.0
    %586 = vmatprep.subr.mxu0 0.0
    %587 = vmatpush1.msra.mxu0 0.0
    %588 = vmatprep.subr.mxu0 0.0
    %589 = vmatpush1.msra.mxu0 0.0
    %590 = vmatprep.subr.mxu0 0.0
    %591 = vmatpush1.msra.mxu0 0.0
    %592 = vmatprep.mubr.f32.mxu0 0.0
    %593 = vmatmul.mubr.f32.gmra.mrb[0].mxu0 %v171
    %v594 = vpop.f32.mrb[0].mxu0
    %v595 = vadd.f32 %v132, %v594
    %v596 = vpop.f32.mrb[0].mxu0
    %v597 = vadd.f32 %v136, %v596
    %598 = vdwg.mxu0
    %599 = vmatprep.subr.mxu0 %v66
    %600 = vmatpush1.msra.mxu0 %v65
    %601 = vmatprep.subr.mxu0 %v82
    %602 = vmatpush1.msra.mxu0 %v81
    %603 = vmatprep.subr.mxu0 0.0
    %604 = vmatpush1.msra.mxu0 0.0
    %605 = vmatprep.subr.mxu0 0.0
    %606 = vmatpush1.msra.mxu0 0.0
    %607 = vmatprep.subr.mxu0 0.0
    %608 = vmatpush1.msra.mxu0 0.0
    %609 = vmatprep.subr.mxu0 0.0
    %610 = vmatpush1.msra.mxu0 0.0
    %611 = vmatprep.subr.mxu0 0.0
    %612 = vmatpush1.msra.mxu0 0.0
    %613 = vmatprep.subr.mxu0 0.0
    %614 = vmatpush1.msra.mxu0 0.0
    %615 = vmatprep.subr.mxu0 0.0
    %616 = vmatpush1.msra.mxu0 0.0
    %617 = vmatprep.subr.mxu0 0.0
    %618 = vmatpush1.msra.mxu0 0.0
    %619 = vmatprep.subr.mxu0 0.0
    %620 = vmatpush1.msra.mxu0 0.0
    %621 = vmatprep.subr.mxu0 0.0
    %622 = vmatpush1.msra.mxu0 0.0
    %623 = vmatprep.subr.mxu0 0.0
    %624 = vmatpush1.msra.mxu0 0.0
    %625 = vmatprep.subr.mxu0 0.0
    %626 = vmatpush1.msra.mxu0 0.0
    %627 = vmatprep.subr.mxu0 0.0
    %628 = vmatpush1.msra.mxu0 0.0
    %629 = vmatprep.subr.mxu0 0.0
    %630 = vmatpush1.msra.mxu0 0.0
    %631 = vmatprep.subr.mxu0 0.0
    %632 = vmatpush1.msra.mxu0 0.0
    %633 = vmatprep.subr.mxu0 0.0
    %634 = vmatpush1.msra.mxu0 0.0
    %635 = vmatprep.subr.mxu0 0.0
    %636 = vmatpush1.msra.mxu0 0.0
    %637 = vmatprep.subr.mxu0 0.0
    %638 = vmatpush1.msra.mxu0 0.0
    %639 = vmatprep.subr.mxu0 0.0
    %640 = vmatpush1.msra.mxu0 0.0
    %641 = vmatprep.subr.mxu0 0.0
    %642 = vmatpush1.msra.mxu0 0.0
    %643 = vmatprep.subr.mxu0 0.0
    %644 = vmatpush1.msra.mxu0 0.0
    %645 = vmatprep.subr.mxu0 0.0
    %646 = vmatpush1.msra.mxu0 0.0
    %647 = vmatprep.subr.mxu0 0.0
    %648 = vmatpush1.msra.mxu0 0.0
    %649 = vmatprep.subr.mxu0 0.0
    %650 = vmatpush1.msra.mxu0 0.0
    %651 = vmatprep.subr.mxu0 0.0
    %652 = vmatpush1.msra.mxu0 0.0
    %653 = vmatprep.subr.mxu0 0.0
    %654 = vmatpush1.msra.mxu0 0.0
    %655 = vmatprep.subr.mxu0 0.0
    %656 = vmatpush1.msra.mxu0 0.0
    %657 = vmatprep.subr.mxu0 0.0
    %658 = vmatpush1.msra.mxu0 0.0
    %659 = vmatprep.subr.mxu0 0.0
    %660 = vmatpush1.msra.mxu0 0.0
    %661 = vmatprep.subr.mxu0 0.0
    %662 = vmatpush1.msra.mxu0 0.0
    %663 = vmatprep.mubr.f32.mxu0 0.0
    %664 = vmatmul.mubr.f32.gmra.mrb[0].mxu0 %v171
    %v665 = vpop.f32.mrb[0].mxu0
    %v666 = vadd.f32 %v140, %v665
    %v667 = vpop.f32.mrb[0].mxu0
    %v668 = vadd.f32 %v144, %v667
    %669 = vdwg.mxu0
    %670 = vmatprep.subr.mxu0 %v68
    %671 = vmatpush1.msra.mxu0 %v67
    %672 = vmatprep.subr.mxu0 %v84
    %673 = vmatpush1.msra.mxu0 %v83
    %674 = vmatprep.subr.mxu0 0.0
    %675 = vmatpush1.msra.mxu0 0.0
    %676 = vmatprep.subr.mxu0 0.0
    %677 = vmatpush1.msra.mxu0 0.0
    %678 = vmatprep.subr.mxu0 0.0
    %679 = vmatpush1.msra.mxu0 0.0
    %680 = vmatprep.subr.mxu0 0.0
    %681 = vmatpush1.msra.mxu0 0.0
    %682 = vmatprep.subr.mxu0 0.0
    %683 = vmatpush1.msra.mxu0 0.0
    %684 = vmatprep.subr.mxu0 0.0
    %685 = vmatpush1.msra.mxu0 0.0
    %686 = vmatprep.subr.mxu0 0.0
    %687 = vmatpush1.msra.mxu0 0.0
    %688 = vmatprep.subr.mxu0 0.0
    %689 = vmatpush1.msra.mxu0 0.0
    %690 = vmatprep.subr.mxu0 0.0
    %691 = vmatpush1.msra.mxu0 0.0
    %692 = vmatprep.subr.mxu0 0.0
    %693 = vmatpush1.msra.mxu0 0.0
    %694 = vmatprep.subr.mxu0 0.0
    %695 = vmatpush1.msra.mxu0 0.0
    %696 = vmatprep.subr.mxu0 0.0
    %697 = vmatpush1.msra.mxu0 0.0
    %698 = vmatprep.subr.mxu0 0.0
    %699 = vmatpush1.msra.mxu0 0.0
    %700 = vmatprep.subr.mxu0 0.0
    %701 = vmatpush1.msra.mxu0 0.0
    %702 = vmatprep.subr.mxu0 0.0
    %703 = vmatpush1.msra.mxu0 0.0
    %704 = vmatprep.subr.mxu0 0.0
    %705 = vmatpush1.msra.mxu0 0.0
    %706 = vmatprep.subr.mxu0 0.0
    %707 = vmatpush1.msra.mxu0 0.0
    %708 = vmatprep.subr.mxu0 0.0
    %709 = vmatpush1.msra.mxu0 0.0
    %710 = vmatprep.subr.mxu0 0.0
    %711 = vmatpush1.msra.mxu0 0.0
    %712 = vmatprep.subr.mxu0 0.0
    %713 = vmatpush1.msra.mxu0 0.0
    %714 = vmatprep.subr.mxu0 0.0
    %715 = vmatpush1.msra.mxu0 0.0
    %716 = vmatprep.subr.mxu0 0.0
    %717 = vmatpush1.msra.mxu0 0.0
    %718 = vmatprep.subr.mxu0 0.0
    %719 = vmatpush1.msra.mxu0 0.0
    %720 = vmatprep.subr.mxu0 0.0
    %721 = vmatpush1.msra.mxu0 0.0
    %722 = vmatprep.subr.mxu0 0.0
    %723 = vmatpush1.msra.mxu0 0.0
    %724 = vmatprep.subr.mxu0 0.0
    %725 = vmatpush1.msra.mxu0 0.0
    %726 = vmatprep.subr.mxu0 0.0
    %727 = vmatpush1.msra.mxu0 0.0
    %728 = vmatprep.subr.mxu0 0.0
    %729 = vmatpush1.msra.mxu0 0.0
    %730 = vmatprep.subr.mxu0 0.0
    %731 = vmatpush1.msra.mxu0 0.0
    %732 = vmatprep.subr.mxu0 0.0
    %733 = vmatpush1.msra.mxu0 0.0
    %734 = vmatprep.mubr.f32.mxu0 0.0
    %735 = vmatmul.mubr.f32.gmra.mrb[0].mxu0 %v171
    %v736 = vpop.f32.mrb[0].mxu0
    %v737 = vadd.f32 %v148, %v736
    %v738 = vpop.f32.mrb[0].mxu0
    %v739 = vadd.f32 %v152, %v738
    %740 = vdwg.mxu0
    %v741 = vld [vmem:[#allocation6] sm:$0xff]
    %v742 = vld [vmem:[#allocation6 + $0x8] sm:$0xff]
    %v743 = vld [vmem:[#allocation6 + $0x10] sm:$0xff]
    %v744 = vld [vmem:[#allocation6 + $0x18] sm:$0xff]
    %v745 = vld [vmem:[#allocation6 + $0x20] sm:$0xff]
    %v746 = vld [vmem:[#allocation6 + $0x28] sm:$0xff]
    %v747 = vld [vmem:[#allocation6 + $0x30] sm:$0xff]
    %v748 = vld [vmem:[#allocation6 + $0x38] sm:$0xff]
    %v749 = vld [vmem:[#allocation6 + $0x40] sm:$0xff]
    %v750 = vld [vmem:[#allocation6 + $0x48] sm:$0xff]
    %v751 = vld [vmem:[#allocation6 + $0x50] sm:$0xff]
    %v752 = vld [vmem:[#allocation6 + $0x58] sm:$0xff]
    %v753 = vld [vmem:[#allocation6 + $0x60] sm:$0xff]
    %v754 = vld [vmem:[#allocation6 + $0x68] sm:$0xff]
    %v755 = vld [vmem:[#allocation6 + $0x70] sm:$0xff]
    %v756 = vld [vmem:[#allocation6 + $0x78] sm:$0xff]
    %vm757 = vcmask 523264
    %v759 = vsel %vm757, 0.0, 0
    %761 = vmatprep.subr.mxu0 %v742
    %762 = vmatpush1.msra.mxu0 %v741
    %763 = vmatprep.subr.mxu0 %v744
    %764 = vmatpush1.msra.mxu0 %v743
    %765 = vmatprep.subr.mxu0 %v746
    %766 = vmatpush1.msra.mxu0 %v745
    %767 = vmatprep.subr.mxu0 %v748
    %768 = vmatpush1.msra.mxu0 %v747
    %769 = vmatprep.subr.mxu0 %v750
    %770 = vmatpush1.msra.mxu0 %v749
    %771 = vmatprep.subr.mxu0 %v752
    %772 = vmatpush1.msra.mxu0 %v751
    %773 = vmatprep.subr.mxu0 %v754
    %774 = vmatpush1.msra.mxu0 %v753
    %775 = vmatprep.subr.mxu0 %v756
    %776 = vmatpush1.msra.mxu0 %v755
    %777 = vmatprep.subr.mxu0 0.0
    %778 = vmatpush1.msra.mxu0 0.0
    %779 = vmatprep.subr.mxu0 0.0
    %780 = vmatpush1.msra.mxu0 0.0
    %781 = vmatprep.subr.mxu0 0.0
    %782 = vmatpush1.msra.mxu0 0.0
    %783 = vmatprep.subr.mxu0 0.0
    %784 = vmatpush1.msra.mxu0 0.0
    %785 = vmatprep.subr.mxu0 0.0
    %786 = vmatpush1.msra.mxu0 0.0
    %787 = vmatprep.subr.mxu0 0.0
    %788 = vmatpush1.msra.mxu0 0.0
    %789 = vmatprep.subr.mxu0 0.0
    %790 = vmatpush1.msra.mxu0 0.0
    %791 = vmatprep.subr.mxu0 0.0
    %792 = vmatpush1.msra.mxu0 0.0
    %793 = vmatprep.subr.mxu0 0.0
    %794 = vmatpush1.msra.mxu0 0.0
    %795 = vmatprep.subr.mxu0 0.0
    %796 = vmatpush1.msra.mxu0 0.0
    %797 = vmatprep.subr.mxu0 0.0
    %798 = vmatpush1.msra.mxu0 0.0
    %799 = vmatprep.subr.mxu0 0.0
    %800 = vmatpush1.msra.mxu0 0.0
    %801 = vmatprep.subr.mxu0 0.0
    %802 = vmatpush1.msra.mxu0 0.0
    %803 = vmatprep.subr.mxu0 0.0
    %804 = vmatpush1.msra.mxu0 0.0
    %805 = vmatprep.subr.mxu0 0.0
    %806 = vmatpush1.msra.mxu0 0.0
    %807 = vmatprep.subr.mxu0 0.0
    %808 = vmatpush1.msra.mxu0 0.0
    %809 = vmatprep.subr.mxu0 0.0
    %810 = vmatpush1.msra.mxu0 0.0
    %811 = vmatprep.subr.mxu0 0.0
    %812 = vmatpush1.msra.mxu0 0.0
    %813 = vmatprep.subr.mxu0 0.0
    %814 = vmatpush1.msra.mxu0 0.0
    %815 = vmatprep.subr.mxu0 0.0
    %816 = vmatpush1.msra.mxu0 0.0
    %817 = vmatprep.subr.mxu0 0.0
    %818 = vmatpush1.msra.mxu0 0.0
    %819 = vmatprep.subr.mxu0 0.0
    %820 = vmatpush1.msra.mxu0 0.0
    %821 = vmatprep.subr.mxu0 0.0
    %822 = vmatpush1.msra.mxu0 0.0
    %823 = vmatprep.subr.mxu0 0.0
    %824 = vmatpush1.msra.mxu0 0.0
    %825 = vmatprep.mubr.f32.mxu0 0.0
    %826 = vmatmul.mubr.f32.gmra.mrb[0].mxu0 %v759
    %v827 = vpop.f32.mrb[0].mxu0
    %v828 = vadd.f32 0.0, %v827
    %v829 = vpop.f32.mrb[0].mxu0
    %v830 = vadd.f32 0.0, %v829
    %831 = vdwg.mxu0
    %v832 = vadd.f32 %v240, %v828
    %v833 = vadd.f32 %v242, %v830
    %v834 = vxor.u32 %v832, 2147483648
    %v835 = vxor.u32 %v833, 2147483648
    %v836 = vmul.f32 %v834, 1.442695
    %v837 = vpow.pop %v836
    %v838 = vmul.f32 %v835, 1.442695
    %v839 = vpow.pop %v838
    %v840 = vadd.f32 %v837, 1.0
    %v841 = vadd.f32 %v839, 1.0
    %v842 = vrcp.pop %v840
    %v843 = vmul.f32 1.0, %v842
    %v844 = vrcp.pop %v841
    %v845 = vmul.f32 1.0, %v844
    %v846 = vmul.f32 %v845, 2.0
    %v847 = vsub.f32 %v846, 1.0
    %v848 = vmul.f32 %v843, 0.0
    %v849 = vmul.f32 %v843, %v847
    %851 = vrot.lane.b32.xlu0 %v849, 64
    %v852 = vpop.permute.xlu0 %851
    %v854 = vadd.f32 %v848, %v852
    %v855 = vtanh.pop %v854
    %v856 = vmul.f32 %v845, %v855
    %858 = vrot.lane.b32.xlu0 %v856, 64
    %v859 = vpop.permute.xlu0 %858
    %vm861 = vcmask 261120
    %862 = vst.msk [vmem:[#allocation2] sm:$0xff] %vm861, %v859
    %vm863 = vcmask 1048320
    %864 = vst.msk [vmem:[#allocation2 + $0x18] sm:$0xff] %vm863, %v856
    %v865 = vsel %vm757, %v859, 0
    %867 = vmatprep.subr.mxu0 %v742
    %868 = vmatpush1.msra.mxu0 %v741
    %869 = vmatprep.subr.mxu0 %v744
    %870 = vmatpush1.msra.mxu0 %v743
    %871 = vmatprep.subr.mxu0 %v746
    %872 = vmatpush1.msra.mxu0 %v745
    %873 = vmatprep.subr.mxu0 %v748
    %874 = vmatpush1.msra.mxu0 %v747
    %875 = vmatprep.subr.mxu0 %v750
    %876 = vmatpush1.msra.mxu0 %v749
    %877 = vmatprep.subr.mxu0 %v752
    %878 = vmatpush1.msra.mxu0 %v751
    %879 = vmatprep.subr.mxu0 %v754
    %880 = vmatpush1.msra.mxu0 %v753
    %881 = vmatprep.subr.mxu0 %v756
    %882 = vmatpush1.msra.mxu0 %v755
    %883 = vmatprep.subr.mxu0 0.0
    %884 = vmatpush1.msra.mxu0 0.0
    %885 = vmatprep.subr.mxu0 0.0
    %886 = vmatpush1.msra.mxu0 0.0
    %887 = vmatprep.subr.mxu0 0.0
    %888 = vmatpush1.msra.mxu0 0.0
    %889 = vmatprep.subr.mxu0 0.0
    %890 = vmatpush1.msra.mxu0 0.0
    %891 = vmatprep.subr.mxu0 0.0
    %892 = vmatpush1.msra.mxu0 0.0
    %893 = vmatprep.subr.mxu0 0.0
    %894 = vmatpush1.msra.mxu0 0.0
    %895 = vmatprep.subr.mxu0 0.0
    %896 = vmatpush1.msra.mxu0 0.0
    %897 = vmatprep.subr.mxu0 0.0
    %898 = vmatpush1.msra.mxu0 0.0
    %899 = vmatprep.subr.mxu0 0.0
    %900 = vmatpush1.msra.mxu0 0.0
    %901 = vmatprep.subr.mxu0 0.0
    %902 = vmatpush1.msra.mxu0 0.0
    %903 = vmatprep.subr.mxu0 0.0
    %904 = vmatpush1.msra.mxu0 0.0
    %905 = vmatprep.subr.mxu0 0.0
    %906 = vmatpush1.msra.mxu0 0.0
    %907 = vmatprep.subr.mxu0 0.0
    %908 = vmatpush1.msra.mxu0 0.0
    %909 = vmatprep.subr.mxu0 0.0
    %910 = vmatpush1.msra.mxu0 0.0
    %911 = vmatprep.subr.mxu0 0.0
    %912 = vmatpush1.msra.mxu0 0.0
    %913 = vmatprep.subr.mxu0 0.0
    %914 = vmatpush1.msra.mxu0 0.0
    %915 = vmatprep.subr.mxu0 0.0
    %916 = vmatpush1.msra.mxu0 0.0
    %917 = vmatprep.subr.mxu0 0.0
    %918 = vmatpush1.msra.mxu0 0.0
    %919 = vmatprep.subr.mxu0 0.0
    %920 = vmatpush1.msra.mxu0 0.0
    %921 = vmatprep.subr.mxu0 0.0
    %922 = vmatpush1.msra.mxu0 0.0
    %923 = vmatprep.subr.mxu0 0.0
    %924 = vmatpush1.msra.mxu0 0.0
    %925 = vmatprep.subr.mxu0 0.0
    %926 = vmatpush1.msra.mxu0 0.0
    %927 = vmatprep.subr.mxu0 0.0
    %928 = vmatpush1.msra.mxu0 0.0
    %929 = vmatprep.subr.mxu0 0.0
    %930 = vmatpush1.msra.mxu0 0.0
    %931 = vmatprep.mubr.f32.mxu0 0.0
    %932 = vmatmul.mubr.f32.gmra.mrb[0].mxu0 %v865
    %v933 = vpop.f32.mrb[0].mxu0
    %v934 = vadd.f32 0.0, %v933
    %v935 = vpop.f32.mrb[0].mxu0
    %v936 = vadd.f32 0.0, %v935
    %937 = vdwg.mxu0
    %v938 = vadd.f32 %v311, %v934
    %v939 = vadd.f32 %v313, %v936
    %v940 = vxor.u32 %v938, 2147483648
    %v941 = vxor.u32 %v939, 2147483648
    %v942 = vmul.f32 %v940, 1.442695
    %v943 = vpow.pop %v942
    %v944 = vmul.f32 %v941, 1.442695
    %v945 = vpow.pop %v944
    %v946 = vadd.f32 %v943, 1.0
    %v947 = vadd.f32 %v945, 1.0
    %v948 = vrcp.pop %v946
    %v949 = vmul.f32 1.0, %v948
    %v950 = vrcp.pop %v947
    %v951 = vmul.f32 1.0, %v950
    %v952 = vmul.f32 %v951, 2.0
    %v953 = vsub.f32 %v952, 1.0
    %v954 = vmul.f32 %v949, %v854
    %v955 = vmul.f32 %v949, %v953
    %957 = vrot.lane.b32.xlu0 %v955, 64
    %v958 = vpop.permute.xlu0 %957
    %v960 = vadd.f32 %v954, %v958
    %v961 = vtanh.pop %v960
    %v962 = vmul.f32 %v951, %v961
    %vm963 = vcmask 785920
    %964 = vst.msk [vmem:[#allocation2] sm:$0xff] %vm963, %v962
    %966 = vrot.lane.b32.xlu0 %v962, 64
    %v967 = vpop.permute.xlu0 %966
    %vm969 = vcmask 523520
    %970 = vst.msk [vmem:[#allocation2 + $0x18] sm:$0xff] %vm969, %v967
    %v971 = vsel %vm757, %v967, 0
    %973 = vmatprep.subr.mxu0 %v742
    %974 = vmatpush1.msra.mxu0 %v741
    %975 = vmatprep.subr.mxu0 %v744
    %976 = vmatpush1.msra.mxu0 %v743
    %977 = vmatprep.subr.mxu0 %v746
    %978 = vmatpush1.msra.mxu0 %v745
    %979 = vmatprep.subr.mxu0 %v748
    %980 = vmatpush1.msra.mxu0 %v747
    %981 = vmatprep.subr.mxu0 %v750
    %982 = vmatpush1.msra.mxu0 %v749
    %983 = vmatprep.subr.mxu0 %v752
    %984 = vmatpush1.msra.mxu0 %v751
    %985 = vmatprep.subr.mxu0 %v754
    %986 = vmatpush1.msra.mxu0 %v753
    %987 = vmatprep.subr.mxu0 %v756
    %988 = vmatpush1.msra.mxu0 %v755
    %989 = vmatprep.subr.mxu0 0.0
    %990 = vmatpush1.msra.mxu0 0.0
    %991 = vmatprep.subr.mxu0 0.0
    %992 = vmatpush1.msra.mxu0 0.0
    %993 = vmatprep.subr.mxu0 0.0
    %994 = vmatpush1.msra.mxu0 0.0
    %995 = vmatprep.subr.mxu0 0.0
    %996 = vmatpush1.msra.mxu0 0.0
    %997 = vmatprep.subr.mxu0 0.0
    %998 = vmatpush1.msra.mxu0 0.0
    %999 = vmatprep.subr.mxu0 0.0
    %1000 = vmatpush1.msra.mxu0 0.0
    %1001 = vmatprep.subr.mxu0 0.0
    %1002 = vmatpush1.msra.mxu0 0.0
    %1003 = vmatprep.subr.mxu0 0.0
    %1004 = vmatpush1.msra.mxu0 0.0
    %1005 = vmatprep.subr.mxu0 0.0
    %1006 = vmatpush1.msra.mxu0 0.0
    %1007 = vmatprep.subr.mxu0 0.0
    %1008 = vmatpush1.msra.mxu0 0.0
    %1009 = vmatprep.subr.mxu0 0.0
    %1010 = vmatpush1.msra.mxu0 0.0
    %1011 = vmatprep.subr.mxu0 0.0
    %1012 = vmatpush1.msra.mxu0 0.0
    %1013 = vmatprep.subr.mxu0 0.0
    %1014 = vmatpush1.msra.mxu0 0.0
    %1015 = vmatprep.subr.mxu0 0.0
    %1016 = vmatpush1.msra.mxu0 0.0
    %1017 = vmatprep.subr.mxu0 0.0
    %1018 = vmatpush1.msra.mxu0 0.0
    %1019 = vmatprep.subr.mxu0 0.0
    %1020 = vmatpush1.msra.mxu0 0.0
    %1021 = vmatprep.subr.mxu0 0.0
    %1022 = vmatpush1.msra.mxu0 0.0
    %1023 = vmatprep.subr.mxu0 0.0
    %1024 = vmatpush1.msra.mxu0 0.0
    %1025 = vmatprep.subr.mxu0 0.0
    %1026 = vmatpush1.msra.mxu0 0.0
    %1027 = vmatprep.subr.mxu0 0.0
    %1028 = vmatpush1.msra.mxu0 0.0
    %1029 = vmatprep.subr.mxu0 0.0
    %1030 = vmatpush1.msra.mxu0 0.0
    %1031 = vmatprep.subr.mxu0 0.0
    %1032 = vmatpush1.msra.mxu0 0.0
    %1033 = vmatprep.subr.mxu0 0.0
    %1034 = vmatpush1.msra.mxu0 0.0
    %1035 = vmatprep.subr.mxu0 0.0
    %1036 = vmatpush1.msra.mxu0 0.0
    %1037 = vmatprep.mubr.f32.mxu0 0.0
    %1038 = vmatmul.mubr.f32.gmra.mrb[0].mxu0 %v971
    %v1039 = vpop.f32.mrb[0].mxu0
    %v1040 = vadd.f32 0.0, %v1039
    %v1041 = vpop.f32.mrb[0].mxu0
    %v1042 = vadd.f32 0.0, %v1041
    %1043 = vdwg.mxu0
    %v1044 = vadd.f32 %v382, %v1040
    %v1045 = vadd.f32 %v384, %v1042
    %v1046 = vxor.u32 %v1044, 2147483648
    %v1047 = vxor.u32 %v1045, 2147483648
    %v1048 = vmul.f32 %v1046, 1.442695
    %v1049 = vpow.pop %v1048
    %v1050 = vmul.f32 %v1047, 1.442695
    %v1051 = vpow.pop %v1050
    %v1052 = vadd.f32 %v1049, 1.0
    %v1053 = vadd.f32 %v1051, 1.0
    %v1054 = vrcp.pop %v1052
    %v1055 = vmul.f32 1.0, %v1054
    %v1056 = vrcp.pop %v1053
    %v1057 = vmul.f32 1.0, %v1056
    %v1058 = vmul.f32 %v1057, 2.0
    %v1059 = vsub.f32 %v1058, 1.0
    %v1060 = vmul.f32 %v1055, %v960
    %v1061 = vmul.f32 %v1055, %v1059
    %1063 = vrot.lane.b32.xlu0 %v1061, 64
    %v1064 = vpop.permute.xlu0 %1063
    %v1066 = vadd.f32 %v1060, %v1064
    %v1067 = vtanh.pop %v1066
    %v1068 = vmul.f32 %v1057, %v1067
    %1070 = vrot.lane.b32.xlu0 %v1068, 64
    %v1071 = vpop.permute.xlu0 %1070
    %1073 = vst.msk [vmem:[#allocation2 + $0x8] sm:$0xff] %vm861, %v1071
    %1074 = vst.msk [vmem:[#allocation2 + $0x10] sm:$0xff] %vm863, %v1068
    %v1075 = vsel %vm757, %v1071, 0
    %1077 = vmatprep.subr.mxu0 %v742
    %1078 = vmatpush1.msra.mxu0 %v741
    %1079 = vmatprep.subr.mxu0 %v744
    %1080 = vmatpush1.msra.mxu0 %v743
    %1081 = vmatprep.subr.mxu0 %v746
    %1082 = vmatpush1.msra.mxu0 %v745
    %1083 = vmatprep.subr.mxu0 %v748
    %1084 = vmatpush1.msra.mxu0 %v747
    %1085 = vmatprep.subr.mxu0 %v750
    %1086 = vmatpush1.msra.mxu0 %v749
    %1087 = vmatprep.subr.mxu0 %v752
    %1088 = vmatpush1.msra.mxu0 %v751
    %1089 = vmatprep.subr.mxu0 %v754
    %1090 = vmatpush1.msra.mxu0 %v753
    %1091 = vmatprep.subr.mxu0 %v756
    %1092 = vmatpush1.msra.mxu0 %v755
    %1093 = vmatprep.subr.mxu0 0.0
    %1094 = vmatpush1.msra.mxu0 0.0
    %1095 = vmatprep.subr.mxu0 0.0
    %1096 = vmatpush1.msra.mxu0 0.0
    %1097 = vmatprep.subr.mxu0 0.0
    %1098 = vmatpush1.msra.mxu0 0.0
    %1099 = vmatprep.subr.mxu0 0.0
    %1100 = vmatpush1.msra.mxu0 0.0
    %1101 = vmatprep.subr.mxu0 0.0
    %1102 = vmatpush1.msra.mxu0 0.0
    %1103 = vmatprep.subr.mxu0 0.0
    %1104 = vmatpush1.msra.mxu0 0.0
    %1105 = vmatprep.subr.mxu0 0.0
    %1106 = vmatpush1.msra.mxu0 0.0
    %1107 = vmatprep.subr.mxu0 0.0
    %1108 = vmatpush1.msra.mxu0 0.0
    %1109 = vmatprep.subr.mxu0 0.0
    %1110 = vmatpush1.msra.mxu0 0.0
    %1111 = vmatprep.subr.mxu0 0.0
    %1112 = vmatpush1.msra.mxu0 0.0
    %1113 = vmatprep.subr.mxu0 0.0
    %1114 = vmatpush1.msra.mxu0 0.0
    %1115 = vmatprep.subr.mxu0 0.0
    %1116 = vmatpush1.msra.mxu0 0.0
    %1117 = vmatprep.subr.mxu0 0.0
    %1118 = vmatpush1.msra.mxu0 0.0
    %1119 = vmatprep.subr.mxu0 0.0
    %1120 = vmatpush1.msra.mxu0 0.0
    %1121 = vmatprep.subr.mxu0 0.0
    %1122 = vmatpush1.msra.mxu0 0.0
    %1123 = vmatprep.subr.mxu0 0.0
    %1124 = vmatpush1.msra.mxu0 0.0
    %1125 = vmatprep.subr.mxu0 0.0
    %1126 = vmatpush1.msra.mxu0 0.0
    %1127 = vmatprep.subr.mxu0 0.0
    %1128 = vmatpush1.msra.mxu0 0.0
    %1129 = vmatprep.subr.mxu0 0.0
    %1130 = vmatpush1.msra.mxu0 0.0
    %1131 = vmatprep.subr.mxu0 0.0
    %1132 = vmatpush1.msra.mxu0 0.0
    %1133 = vmatprep.subr.mxu0 0.0
    %1134 = vmatpush1.msra.mxu0 0.0
    %1135 = vmatprep.subr.mxu0 0.0
    %1136 = vmatpush1.msra.mxu0 0.0
    %1137 = vmatprep.subr.mxu0 0.0
    %1138 = vmatpush1.msra.mxu0 0.0
    %1139 = vmatprep.subr.mxu0 0.0
    %1140 = vmatpush1.msra.mxu0 0.0
    %1141 = vmatprep.mubr.f32.mxu0 0.0
    %1142 = vmatmul.mubr.f32.gmra.mrb[0].mxu0 %v1075
    %v1143 = vpop.f32.mrb[0].mxu0
    %v1144 = vadd.f32 0.0, %v1143
    %v1145 = vpop.f32.mrb[0].mxu0
    %v1146 = vadd.f32 0.0, %v1145
    %1147 = vdwg.mxu0
    %v1148 = vadd.f32 %v453, %v1144
    %v1149 = vadd.f32 %v455, %v1146
    %v1150 = vxor.u32 %v1148, 2147483648
    %v1151 = vxor.u32 %v1149, 2147483648
    %v1152 = vmul.f32 %v1150, 1.442695
    %v1153 = vpow.pop %v1152
    %v1154 = vmul.f32 %v1151, 1.442695
    %v1155 = vpow.pop %v1154
    %v1156 = vadd.f32 %v1153, 1.0
    %v1157 = vadd.f32 %v1155, 1.0
    %v1158 = vrcp.pop %v1156
    %v1159 = vmul.f32 1.0, %v1158
    %v1160 = vrcp.pop %v1157
    %v1161 = vmul.f32 1.0, %v1160
    %v1162 = vmul.f32 %v1161, 2.0
    %v1163 = vsub.f32 %v1162, 1.0
    %v1164 = vmul.f32 %v1159, %v1066
    %v1165 = vmul.f32 %v1159, %v1163
    %1167 = vrot.lane.b32.xlu0 %v1165, 64
    %v1168 = vpop.permute.xlu0 %1167
    %v1170 = vadd.f32 %v1164, %v1168
    %v1171 = vtanh.pop %v1170
    %v1172 = vmul.f32 %v1161, %v1171
    %1173 = vst.msk [vmem:[#allocation2 + $0x8] sm:$0xff] %vm963, %v1172
    %1175 = vrot.lane.b32.xlu0 %v1172, 64
    %v1176 = vpop.permute.xlu0 %1175
    %1178 = vst.msk [vmem:[#allocation2 + $0x10] sm:$0xff] %vm969, %v1176
    %v1179 = vsel %vm757, %v1176, 0
    %1181 = vmatprep.subr.mxu0 %v742
    %1182 = vmatpush1.msra.mxu0 %v741
    %1183 = vmatprep.subr.mxu0 %v744
    %1184 = vmatpush1.msra.mxu0 %v743
    %1185 = vmatprep.subr.mxu0 %v746
    %1186 = vmatpush1.msra.mxu0 %v745
    %1187 = vmatprep.subr.mxu0 %v748
    %1188 = vmatpush1.msra.mxu0 %v747
    %1189 = vmatprep.subr.mxu0 %v750
    %1190 = vmatpush1.msra.mxu0 %v749
    %1191 = vmatprep.subr.mxu0 %v752
    %1192 = vmatpush1.msra.mxu0 %v751
    %1193 = vmatprep.subr.mxu0 %v754
    %1194 = vmatpush1.msra.mxu0 %v753
    %1195 = vmatprep.subr.mxu0 %v756
    %1196 = vmatpush1.msra.mxu0 %v755
    %1197 = vmatprep.subr.mxu0 0.0
    %1198 = vmatpush1.msra.mxu0 0.0
    %1199 = vmatprep.subr.mxu0 0.0
    %1200 = vmatpush1.msra.mxu0 0.0
    %1201 = vmatprep.subr.mxu0 0.0
    %1202 = vmatpush1.msra.mxu0 0.0
    %1203 = vmatprep.subr.mxu0 0.0
    %1204 = vmatpush1.msra.mxu0 0.0
    %1205 = vmatprep.subr.mxu0 0.0
    %1206 = vmatpush1.msra.mxu0 0.0
    %1207 = vmatprep.subr.mxu0 0.0
    %1208 = vmatpush1.msra.mxu0 0.0
    %1209 = vmatprep.subr.mxu0 0.0
    %1210 = vmatpush1.msra.mxu0 0.0
    %1211 = vmatprep.subr.mxu0 0.0
    %1212 = vmatpush1.msra.mxu0 0.0
    %1213 = vmatprep.subr.mxu0 0.0
    %1214 = vmatpush1.msra.mxu0 0.0
    %1215 = vmatprep.subr.mxu0 0.0
    %1216 = vmatpush1.msra.mxu0 0.0
    %1217 = vmatprep.subr.mxu0 0.0
    %1218 = vmatpush1.msra.mxu0 0.0
    %1219 = vmatprep.subr.mxu0 0.0
    %1220 = vmatpush1.msra.mxu0 0.0
    %1221 = vmatprep.subr.mxu0 0.0
    %1222 = vmatpush1.msra.mxu0 0.0
    %1223 = vmatprep.subr.mxu0 0.0
    %1224 = vmatpush1.msra.mxu0 0.0
    %1225 = vmatprep.subr.mxu0 0.0
    %1226 = vmatpush1.msra.mxu0 0.0
    %1227 = vmatprep.subr.mxu0 0.0
    %1228 = vmatpush1.msra.mxu0 0.0
    %1229 = vmatprep.subr.mxu0 0.0
    %1230 = vmatpush1.msra.mxu0 0.0
    %1231 = vmatprep.subr.mxu0 0.0
    %1232 = vmatpush1.msra.mxu0 0.0
    %1233 = vmatprep.subr.mxu0 0.0
    %1234 = vmatpush1.msra.mxu0 0.0
    %1235 = vmatprep.subr.mxu0 0.0
    %1236 = vmatpush1.msra.mxu0 0.0
    %1237 = vmatprep.subr.mxu0 0.0
    %1238 = vmatpush1.msra.mxu0 0.0
    %1239 = vmatprep.subr.mxu0 0.0
    %1240 = vmatpush1.msra.mxu0 0.0
    %1241 = vmatprep.subr.mxu0 0.0
    %1242 = vmatpush1.msra.mxu0 0.0
    %1243 = vmatprep.subr.mxu0 0.0
    %1244 = vmatpush1.msra.mxu0 0.0
    %1245 = vmatprep.mubr.f32.mxu0 0.0
    %1246 = vmatmul.mubr.f32.gmra.mrb[0].mxu0 %v1179
    %v1247 = vpop.f32.mrb[0].mxu0
    %v1248 = vadd.f32 0.0, %v1247
    %v1249 = vpop.f32.mrb[0].mxu0
    %v1250 = vadd.f32 0.0, %v1249
    %1251 = vdwg.mxu0
    %v1252 = vadd.f32 %v524, %v1248
    %v1253 = vadd.f32 %v526, %v1250
    %v1254 = vxor.u32 %v1252, 2147483648
    %v1255 = vxor.u32 %v1253, 2147483648
    %v1256 = vmul.f32 %v1254, 1.442695
    %v1257 = vpow.pop %v1256
    %v1258 = vmul.f32 %v1255, 1.442695
    %v1259 = vpow.pop %v1258
    %v1260 = vadd.f32 %v1257, 1.0
    %v1261 = vadd.f32 %v1259, 1.0
    %v1262 = vrcp.pop %v1260
    %v1263 = vmul.f32 1.0, %v1262
    %v1264 = vrcp.pop %v1261
    %v1265 = vmul.f32 1.0, %v1264
    %v1266 = vmul.f32 %v1265, 2.0
    %v1267 = vsub.f32 %v1266, 1.0
    %v1268 = vmul.f32 %v1263, %v1170
    %v1269 = vmul.f32 %v1263, %v1267
    %1271 = vrot.lane.b32.xlu0 %v1269, 64
    %v1272 = vpop.permute.xlu0 %1271
    %v1274 = vadd.f32 %v1268, %v1272
    %v1275 = vtanh.pop %v1274
    %v1276 = vmul.f32 %v1265, %v1275
    %1278 = vrot.lane.b32.xlu0 %v1276, 64
    %v1279 = vpop.permute.xlu0 %1278
    %1281 = vst.msk [vmem:[#allocation2 + $0x10] sm:$0xff] %vm861, %v1279
    %1282 = vst.msk [vmem:[#allocation2 + $0x8] sm:$0xff] %vm863, %v1276
    %v1283 = vsel %vm757, %v1279, 0
    %1285 = vmatprep.subr.mxu0 %v742
    %1286 = vmatpush1.msra.mxu0 %v741
    %1287 = vmatprep.subr.mxu0 %v744
    %1288 = vmatpush1.msra.mxu0 %v743
    %1289 = vmatprep.subr.mxu0 %v746
    %1290 = vmatpush1.msra.mxu0 %v745
    %1291 = vmatprep.subr.mxu0 %v748
    %1292 = vmatpush1.msra.mxu0 %v747
    %1293 = vmatprep.subr.mxu0 %v750
    %1294 = vmatpush1.msra.mxu0 %v749
    %1295 = vmatprep.subr.mxu0 %v752
    %1296 = vmatpush1.msra.mxu0 %v751
    %1297 = vmatprep.subr.mxu0 %v754
    %1298 = vmatpush1.msra.mxu0 %v753
    %1299 = vmatprep.subr.mxu0 %v756
    %1300 = vmatpush1.msra.mxu0 %v755
    %1301 = vmatprep.subr.mxu0 0.0
    %1302 = vmatpush1.msra.mxu0 0.0
    %1303 = vmatprep.subr.mxu0 0.0
    %1304 = vmatpush1.msra.mxu0 0.0
    %1305 = vmatprep.subr.mxu0 0.0
    %1306 = vmatpush1.msra.mxu0 0.0
    %1307 = vmatprep.subr.mxu0 0.0
    %1308 = vmatpush1.msra.mxu0 0.0
    %1309 = vmatprep.subr.mxu0 0.0
    %1310 = vmatpush1.msra.mxu0 0.0
    %1311 = vmatprep.subr.mxu0 0.0
    %1312 = vmatpush1.msra.mxu0 0.0
    %1313 = vmatprep.subr.mxu0 0.0
    %1314 = vmatpush1.msra.mxu0 0.0
    %1315 = vmatprep.subr.mxu0 0.0
    %1316 = vmatpush1.msra.mxu0 0.0
    %1317 = vmatprep.subr.mxu0 0.0
    %1318 = vmatpush1.msra.mxu0 0.0
    %1319 = vmatprep.subr.mxu0 0.0
    %1320 = vmatpush1.msra.mxu0 0.0
    %1321 = vmatprep.subr.mxu0 0.0
    %1322 = vmatpush1.msra.mxu0 0.0
    %1323 = vmatprep.subr.mxu0 0.0
    %1324 = vmatpush1.msra.mxu0 0.0
    %1325 = vmatprep.subr.mxu0 0.0
    %1326 = vmatpush1.msra.mxu0 0.0
    %1327 = vmatprep.subr.mxu0 0.0
    %1328 = vmatpush1.msra.mxu0 0.0
    %1329 = vmatprep.subr.mxu0 0.0
    %1330 = vmatpush1.msra.mxu0 0.0
    %1331 = vmatprep.subr.mxu0 0.0
    %1332 = vmatpush1.msra.mxu0 0.0
    %1333 = vmatprep.subr.mxu0 0.0
    %1334 = vmatpush1.msra.mxu0 0.0
    %1335 = vmatprep.subr.mxu0 0.0
    %1336 = vmatpush1.msra.mxu0 0.0
    %1337 = vmatprep.subr.mxu0 0.0
    %1338 = vmatpush1.msra.mxu0 0.0
    %1339 = vmatprep.subr.mxu0 0.0
    %1340 = vmatpush1.msra.mxu0 0.0
    %1341 = vmatprep.subr.mxu0 0.0
    %1342 = vmatpush1.msra.mxu0 0.0
    %1343 = vmatprep.subr.mxu0 0.0
    %1344 = vmatpush1.msra.mxu0 0.0
    %1345 = vmatprep.subr.mxu0 0.0
    %1346 = vmatpush1.msra.mxu0 0.0
    %1347 = vmatprep.subr.mxu0 0.0
    %1348 = vmatpush1.msra.mxu0 0.0
    %1349 = vmatprep.mubr.f32.mxu0 0.0
    %1350 = vmatmul.mubr.f32.gmra.mrb[0].mxu0 %v1283
    %v1351 = vpop.f32.mrb[0].mxu0
    %v1352 = vadd.f32 0.0, %v1351
    %v1353 = vpop.f32.mrb[0].mxu0
    %v1354 = vadd.f32 0.0, %v1353
    %1355 = vdwg.mxu0
    %v1356 = vadd.f32 %v595, %v1352
    %v1357 = vadd.f32 %v597, %v1354
    %v1358 = vxor.u32 %v1356, 2147483648
    %v1359 = vxor.u32 %v1357, 2147483648
    %v1360 = vmul.f32 %v1358, 1.442695
    %v1361 = vpow.pop %v1360
    %v1362 = vmul.f32 %v1359, 1.442695
    %v1363 = vpow.pop %v1362
    %v1364 = vadd.f32 %v1361, 1.0
    %v1365 = vadd.f32 %v1363, 1.0
    %v1366 = vrcp.pop %v1364
    %v1367 = vmul.f32 1.0, %v1366
    %v1368 = vrcp.pop %v1365
    %v1369 = vmul.f32 1.0, %v1368
    %v1370 = vmul.f32 %v1369, 2.0
    %v1371 = vsub.f32 %v1370, 1.0
    %v1372 = vmul.f32 %v1367, %v1274
    %v1373 = vmul.f32 %v1367, %v1371
    %1375 = vrot.lane.b32.xlu0 %v1373, 64
    %v1376 = vpop.permute.xlu0 %1375
    %v1378 = vadd.f32 %v1372, %v1376
    %v1379 = vtanh.pop %v1378
    %v1380 = vmul.f32 %v1369, %v1379
    %1381 = vst.msk [vmem:[#allocation2 + $0x10] sm:$0xff] %vm963, %v1380
    %1383 = vrot.lane.b32.xlu0 %v1380, 64
    %v1384 = vpop.permute.xlu0 %1383
    %1386 = vst.msk [vmem:[#allocation2 + $0x8] sm:$0xff] %vm969, %v1384
    %v1387 = vsel %vm757, %v1384, 0
    %1389 = vmatprep.subr.mxu0 %v742
    %1390 = vmatpush1.msra.mxu0 %v741
    %1391 = vmatprep.subr.mxu0 %v744
    %1392 = vmatpush1.msra.mxu0 %v743
    %1393 = vmatprep.subr.mxu0 %v746
    %1394 = vmatpush1.msra.mxu0 %v745
    %1395 = vmatprep.subr.mxu0 %v748
    %1396 = vmatpush1.msra.mxu0 %v747
    %1397 = vmatprep.subr.mxu0 %v750
    %1398 = vmatpush1.msra.mxu0 %v749
    %1399 = vmatprep.subr.mxu0 %v752
    %1400 = vmatpush1.msra.mxu0 %v751
    %1401 = vmatprep.subr.mxu0 %v754
    %1402 = vmatpush1.msra.mxu0 %v753
    %1403 = vmatprep.subr.mxu0 %v756
    %1404 = vmatpush1.msra.mxu0 %v755
    %1405 = vmatprep.subr.mxu0 0.0
    %1406 = vmatpush1.msra.mxu0 0.0
    %1407 = vmatprep.subr.mxu0 0.0
    %1408 = vmatpush1.msra.mxu0 0.0
    %1409 = vmatprep.subr.mxu0 0.0
    %1410 = vmatpush1.msra.mxu0 0.0
    %1411 = vmatprep.subr.mxu0 0.0
    %1412 = vmatpush1.msra.mxu0 0.0
    %1413 = vmatprep.subr.mxu0 0.0
    %1414 = vmatpush1.msra.mxu0 0.0
    %1415 = vmatprep.subr.mxu0 0.0
    %1416 = vmatpush1.msra.mxu0 0.0
    %1417 = vmatprep.subr.mxu0 0.0
    %1418 = vmatpush1.msra.mxu0 0.0
    %1419 = vmatprep.subr.mxu0 0.0
    %1420 = vmatpush1.msra.mxu0 0.0
    %1421 = vmatprep.subr.mxu0 0.0
    %1422 = vmatpush1.msra.mxu0 0.0
    %1423 = vmatprep.subr.mxu0 0.0
    %1424 = vmatpush1.msra.mxu0 0.0
    %1425 = vmatprep.subr.mxu0 0.0
    %1426 = vmatpush1.msra.mxu0 0.0
    %1427 = vmatprep.subr.mxu0 0.0
    %1428 = vmatpush1.msra.mxu0 0.0
    %1429 = vmatprep.subr.mxu0 0.0
    %1430 = vmatpush1.msra.mxu0 0.0
    %1431 = vmatprep.subr.mxu0 0.0
    %1432 = vmatpush1.msra.mxu0 0.0
    %1433 = vmatprep.subr.mxu0 0.0
    %1434 = vmatpush1.msra.mxu0 0.0
    %1435 = vmatprep.subr.mxu0 0.0
    %1436 = vmatpush1.msra.mxu0 0.0
    %1437 = vmatprep.subr.mxu0 0.0
    %1438 = vmatpush1.msra.mxu0 0.0
    %1439 = vmatprep.subr.mxu0 0.0
    %1440 = vmatpush1.msra.mxu0 0.0
    %1441 = vmatprep.subr.mxu0 0.0
    %1442 = vmatpush1.msra.mxu0 0.0
    %1443 = vmatprep.subr.mxu0 0.0
    %1444 = vmatpush1.msra.mxu0 0.0
    %1445 = vmatprep.subr.mxu0 0.0
    %1446 = vmatpush1.msra.mxu0 0.0
    %1447 = vmatprep.subr.mxu0 0.0
    %1448 = vmatpush1.msra.mxu0 0.0
    %1449 = vmatprep.subr.mxu0 0.0
    %1450 = vmatpush1.msra.mxu0 0.0
    %1451 = vmatprep.subr.mxu0 0.0
    %1452 = vmatpush1.msra.mxu0 0.0
    %1453 = vmatprep.mubr.f32.mxu0 0.0
    %1454 = vmatmul.mubr.f32.gmra.mrb[0].mxu0 %v1387
    %v1455 = vpop.f32.mrb[0].mxu0
    %v1456 = vadd.f32 0.0, %v1455
    %v1457 = vpop.f32.mrb[0].mxu0
    %v1458 = vadd.f32 0.0, %v1457
    %1459 = vdwg.mxu0
    %v1460 = vadd.f32 %v666, %v1456
    %v1461 = vadd.f32 %v668, %v1458
    %v1462 = vxor.u32 %v1460, 2147483648
    %v1463 = vxor.u32 %v1461, 2147483648
    %v1464 = vmul.f32 %v1462, 1.442695
    %v1465 = vpow.pop %v1464
    %v1466 = vmul.f32 %v1463, 1.442695
    %v1467 = vpow.pop %v1466
    %v1468 = vadd.f32 %v1465, 1.0
    %v1469 = vadd.f32 %v1467, 1.0
    %v1470 = vrcp.pop %v1468
    %v1471 = vmul.f32 1.0, %v1470
    %v1472 = vrcp.pop %v1469
    %v1473 = vmul.f32 1.0, %v1472
    %v1474 = vmul.f32 %v1473, 2.0
    %v1475 = vsub.f32 %v1474, 1.0
    %v1476 = vmul.f32 %v1471, %v1378
    %v1477 = vmul.f32 %v1471, %v1475
    %1479 = vrot.lane.b32.xlu0 %v1477, 64
    %v1480 = vpop.permute.xlu0 %1479
    %v1482 = vadd.f32 %v1476, %v1480
    %v1483 = vtanh.pop %v1482
    %v1484 = vmul.f32 %v1473, %v1483
    %1486 = vrot.lane.b32.xlu0 %v1484, 64
    %v1487 = vpop.permute.xlu0 %1486
    %1489 = vst.msk [vmem:[#allocation2 + $0x18] sm:$0xff] %vm861, %v1487
    %1490 = vst.msk [vmem:[#allocation2] sm:$0xff] %vm863, %v1484
    %v1491 = vsel %vm757, %v1487, 0
    %1493 = vmatprep.subr.mxu0 %v742
    %1494 = vmatpush1.msra.mxu0 %v741
    %1495 = vmatprep.subr.mxu0 %v744
    %1496 = vmatpush1.msra.mxu0 %v743
    %1497 = vmatprep.subr.mxu0 %v746
    %1498 = vmatpush1.msra.mxu0 %v745
    %1499 = vmatprep.subr.mxu0 %v748
    %1500 = vmatpush1.msra.mxu0 %v747
    %1501 = vmatprep.subr.mxu0 %v750
    %1502 = vmatpush1.msra.mxu0 %v749
    %1503 = vmatprep.subr.mxu0 %v752
    %1504 = vmatpush1.msra.mxu0 %v751
    %1505 = vmatprep.subr.mxu0 %v754
    %1506 = vmatpush1.msra.mxu0 %v753
    %1507 = vmatprep.subr.mxu0 %v756
    %1508 = vmatpush1.msra.mxu0 %v755
    %1509 = vmatprep.subr.mxu0 0.0
    %1510 = vmatpush1.msra.mxu0 0.0
    %1511 = vmatprep.subr.mxu0 0.0
    %1512 = vmatpush1.msra.mxu0 0.0
    %1513 = vmatprep.subr.mxu0 0.0
    %1514 = vmatpush1.msra.mxu0 0.0
    %1515 = vmatprep.subr.mxu0 0.0
    %1516 = vmatpush1.msra.mxu0 0.0
    %1517 = vmatprep.subr.mxu0 0.0
    %1518 = vmatpush1.msra.mxu0 0.0
    %1519 = vmatprep.subr.mxu0 0.0
    %1520 = vmatpush1.msra.mxu0 0.0
    %1521 = vmatprep.subr.mxu0 0.0
    %1522 = vmatpush1.msra.mxu0 0.0
    %1523 = vmatprep.subr.mxu0 0.0
    %1524 = vmatpush1.msra.mxu0 0.0
    %1525 = vmatprep.subr.mxu0 0.0
    %1526 = vmatpush1.msra.mxu0 0.0
    %1527 = vmatprep.subr.mxu0 0.0
    %1528 = vmatpush1.msra.mxu0 0.0
    %1529 = vmatprep.subr.mxu0 0.0
    %1530 = vmatpush1.msra.mxu0 0.0
    %1531 = vmatprep.subr.mxu0 0.0
    %1532 = vmatpush1.msra.mxu0 0.0
    %1533 = vmatprep.subr.mxu0 0.0
    %1534 = vmatpush1.msra.mxu0 0.0
    %1535 = vmatprep.subr.mxu0 0.0
    %1536 = vmatpush1.msra.mxu0 0.0
    %1537 = vmatprep.subr.mxu0 0.0
    %1538 = vmatpush1.msra.mxu0 0.0
    %1539 = vmatprep.subr.mxu0 0.0
    %1540 = vmatpush1.msra.mxu0 0.0
    %1541 = vmatprep.subr.mxu0 0.0
    %1542 = vmatpush1.msra.mxu0 0.0
    %1543 = vmatprep.subr.mxu0 0.0
    %1544 = vmatpush1.msra.mxu0 0.0
    %1545 = vmatprep.subr.mxu0 0.0
    %1546 = vmatpush1.msra.mxu0 0.0
    %1547 = vmatprep.subr.mxu0 0.0
    %1548 = vmatpush1.msra.mxu0 0.0
    %1549 = vmatprep.subr.mxu0 0.0
    %1550 = vmatpush1.msra.mxu0 0.0
    %1551 = vmatprep.subr.mxu0 0.0
    %1552 = vmatpush1.msra.mxu0 0.0
    %1553 = vmatprep.subr.mxu0 0.0
    %1554 = vmatpush1.msra.mxu0 0.0
    %1555 = vmatprep.subr.mxu0 0.0
    %1556 = vmatpush1.msra.mxu0 0.0
    %1557 = vmatprep.mubr.f32.mxu0 0.0
    %1558 = vmatmul.mubr.f32.gmra.mrb[0].mxu0 %v1491
    %v1559 = vpop.f32.mrb[0].mxu0
    %v1560 = vadd.f32 0.0, %v1559
    %v1561 = vpop.f32.mrb[0].mxu0
    %v1562 = vadd.f32 0.0, %v1561
    %1563 = vdwg.mxu0
    %v1564 = vadd.f32 %v737, %v1560
    %v1565 = vadd.f32 %v739, %v1562
    %v1566 = vxor.u32 %v1564, 2147483648
    %v1567 = vxor.u32 %v1565, 2147483648
    %v1568 = vmul.f32 %v1566, 1.442695
    %v1569 = vpow.pop %v1568
    %v1570 = vmul.f32 %v1567, 1.442695
    %v1571 = vpow.pop %v1570
    %v1572 = vadd.f32 %v1569, 1.0
    %v1573 = vadd.f32 %v1571, 1.0
    %v1574 = vrcp.pop %v1572
    %v1575 = vmul.f32 1.0, %v1574
    %v1576 = vrcp.pop %v1573
    %v1577 = vmul.f32 1.0, %v1576
    %v1578 = vmul.f32 %v1577, 2.0
    %v1579 = vsub.f32 %v1578, 1.0
    %v1580 = vmul.f32 %v1575, %v1482
    %v1581 = vmul.f32 %v1575, %v1579
    %1583 = vrot.lane.b32.xlu0 %v1581, 64
    %v1584 = vpop.permute.xlu0 %1583
    %v1586 = vadd.f32 %v1580, %v1584
    %v1587 = vtanh.pop %v1586
    %v1588 = vmul.f32 %v1577, %v1587
    %1589 = vst.msk [vmem:[#allocation2 + $0x18] sm:$0xff] %vm963, %v1588
    %1591 = vrot.lane.b32.xlu0 %v1588, 64
    %v1592 = vpop.permute.xlu0 %1591
    %1594 = vst.msk [vmem:[#allocation2] sm:$0xff] %vm969, %v1592
    %v1595 = vld [vmem:[%s4] sm:$0xff]
    %v1596 = vld [vmem:[%s4 + $0x8] sm:$0xff]
    %v1597 = vld [vmem:[%s4 + $0x10] sm:$0xff]
    %v1598 = vld [vmem:[%s4 + $0x18] sm:$0xff]
    %v1599 = vld [vmem:[%s4 + $0x20] sm:$0xff]
    %v1600 = vld [vmem:[%s4 + $0x28] sm:$0xff]
    %v1601 = vld [vmem:[%s4 + $0x30] sm:$0xff]
    %v1602 = vld [vmem:[%s4 + $0x38] sm:$0xff]
    %v1603 = vld [vmem:[%s5] sm:$0x1]
    %v1604 = vld [vmem:[#allocation2] sm:$0xff]
    %v1605 = vmax.f32 %v1604, 0.0
    %v1607 = vlaneseq
    %v1608 = vshrl.u32 %v1607, 7
    %v1609 = vsub.s32 0, %v1608
    %v1610 = vrot.slane %v1603, %v1609
    %v1613 = vsel %vm757, %v1605, 0
    %1615 = vmatprep.subr.mxu0 0.0
    %1616 = vmatpush1.msra.mxu0 %v1595
    %1617 = vmatprep.subr.mxu0 0.0
    %1618 = vmatpush1.msra.mxu0 %v1596
    %1619 = vmatprep.subr.mxu0 0.0
    %1620 = vmatpush1.msra.mxu0 %v1597
    %1621 = vmatprep.subr.mxu0 0.0
    %1622 = vmatpush1.msra.mxu0 %v1598
    %1623 = vmatprep.subr.mxu0 0.0
    %1624 = vmatpush1.msra.mxu0 %v1599
    %1625 = vmatprep.subr.mxu0 0.0
    %1626 = vmatpush1.msra.mxu0 %v1600
    %1627 = vmatprep.subr.mxu0 0.0
    %1628 = vmatpush1.msra.mxu0 %v1601
    %1629 = vmatprep.subr.mxu0 0.0
    %1630 = vmatpush1.msra.mxu0 %v1602
    %1631 = vmatprep.subr.mxu0 0.0
    %1632 = vmatpush1.msra.mxu0 0.0
    %1633 = vmatprep.subr.mxu0 0.0
    %1634 = vmatpush1.msra.mxu0 0.0
    %1635 = vmatprep.subr.mxu0 0.0
    %1636 = vmatpush1.msra.mxu0 0.0
    %1637 = vmatprep.subr.mxu0 0.0
    %1638 = vmatpush1.msra.mxu0 0.0
    %1639 = vmatprep.subr.mxu0 0.0
    %1640 = vmatpush1.msra.mxu0 0.0
    %1641 = vmatprep.subr.mxu0 0.0
    %1642 = vmatpush1.msra.mxu0 0.0
    %1643 = vmatprep.subr.mxu0 0.0
    %1644 = vmatpush1.msra.mxu0 0.0
    %1645 = vmatprep.subr.mxu0 0.0
    %1646 = vmatpush1.msra.mxu0 0.0
    %1647 = vmatprep.subr.mxu0 0.0
    %1648 = vmatpush1.msra.mxu0 0.0
    %1649 = vmatprep.subr.mxu0 0.0
    %1650 = vmatpush1.msra.mxu0 0.0
    %1651 = vmatprep.subr.mxu0 0.0
    %1652 = vmatpush1.msra.mxu0 0.0
    %1653 = vmatprep.subr.mxu0 0.0
    %1654 = vmatpush1.msra.mxu0 0.0
    %1655 = vmatprep.subr.mxu0 0.0
    %1656 = vmatpush1.msra.mxu0 0.0
    %1657 = vmatprep.subr.mxu0 0.0
    %1658 = vmatpush1.msra.mxu0 0.0
    %1659 = vmatprep.subr.mxu0 0.0
    %1660 = vmatpush1.msra.mxu0 0.0
    %1661 = vmatprep.subr.mxu0 0.0
    %1662 = vmatpush1.msra.mxu0 0.0
    %1663 = vmatprep.subr.mxu0 0.0
    %1664 = vmatpush1.msra.mxu0 0.0
    %1665 = vmatprep.subr.mxu0 0.0
    %1666 = vmatpush1.msra.mxu0 0.0
    %1667 = vmatprep.subr.mxu0 0.0
    %1668 = vmatpush1.msra.mxu0 0.0
    %1669 = vmatprep.subr.mxu0 0.0
    %1670 = vmatpush1.msra.mxu0 0.0
    %1671 = vmatprep.subr.mxu0 0.0
    %1672 = vmatpush1.msra.mxu0 0.0
    %1673 = vmatprep.subr.mxu0 0.0
    %1674 = vmatpush1.msra.mxu0 0.0
    %1675 = vmatprep.subr.mxu0 0.0
    %1676 = vmatpush1.msra.mxu0 0.0
    %1677 = vmatprep.subr.mxu0 0.0
    %1678 = vmatpush1.msra.mxu0 0.0
    %1679 = vmatprep.mubr.f32.mxu0 0.0
    %1680 = vmatmul.mubr.f32.gmra.mrb[0].mxu0 %v1613
    %v1681 = vpop.f32.mrb[0].mxu0
    %v1682 = vadd.f32 %v1610, %v1681
    %v1683 = vpop.f32.mrb[0].mxu0
    %1684 = vdwg.mxu0
    %1685 = vst.msk [vmem:[#allocation8] sm:$0xff] %vm169, %v1682
    %v1686 = vld [vmem:[#allocation2] sm:$0xff]
    %v1687 = vmax.f32 %v1686, 0.0
    %1689 = vrot.lane.b32.xlu0 %v1687, 64
    %v1690 = vpop.permute.xlu0 %1689
    %v1691 = vsel %vm757, %v1690, 0
    %1693 = vmatprep.subr.mxu0 0.0
    %1694 = vmatpush1.msra.mxu0 %v1595
    %1695 = vmatprep.subr.mxu0 0.0
    %1696 = vmatpush1.msra.mxu0 %v1596
    %1697 = vmatprep.subr.mxu0 0.0
    %1698 = vmatpush1.msra.mxu0 %v1597
    %1699 = vmatprep.subr.mxu0 0.0
    %1700 = vmatpush1.msra.mxu0 %v1598
    %1701 = vmatprep.subr.mxu0 0.0
    %1702 = vmatpush1.msra.mxu0 %v1599
    %1703 = vmatprep.subr.mxu0 0.0
    %1704 = vmatpush1.msra.mxu0 %v1600
    %1705 = vmatprep.subr.mxu0 0.0
    %1706 = vmatpush1.msra.mxu0 %v1601
    %1707 = vmatprep.subr.mxu0 0.0
    %1708 = vmatpush1.msra.mxu0 %v1602
    %1709 = vmatprep.subr.mxu0 0.0
    %1710 = vmatpush1.msra.mxu0 0.0
    %1711 = vmatprep.subr.mxu0 0.0
    %1712 = vmatpush1.msra.mxu0 0.0
    %1713 = vmatprep.subr.mxu0 0.0
    %1714 = vmatpush1.msra.mxu0 0.0
    %1715 = vmatprep.subr.mxu0 0.0
    %1716 = vmatpush1.msra.mxu0 0.0
    %1717 = vmatprep.subr.mxu0 0.0
    %1718 = vmatpush1.msra.mxu0 0.0
    %1719 = vmatprep.subr.mxu0 0.0
    %1720 = vmatpush1.msra.mxu0 0.0
    %1721 = vmatprep.subr.mxu0 0.0
    %1722 = vmatpush1.msra.mxu0 0.0
    %1723 = vmatprep.subr.mxu0 0.0
    %1724 = vmatpush1.msra.mxu0 0.0
    %1725 = vmatprep.subr.mxu0 0.0
    %1726 = vmatpush1.msra.mxu0 0.0
    %1727 = vmatprep.subr.mxu0 0.0
    %1728 = vmatpush1.msra.mxu0 0.0
    %1729 = vmatprep.subr.mxu0 0.0
    %1730 = vmatpush1.msra.mxu0 0.0
    %1731 = vmatprep.subr.mxu0 0.0
    %1732 = vmatpush1.msra.mxu0 0.0
    %1733 = vmatprep.subr.mxu0 0.0
    %1734 = vmatpush1.msra.mxu0 0.0
    %1735 = vmatprep.subr.mxu0 0.0
    %1736 = vmatpush1.msra.mxu0 0.0
    %1737 = vmatprep.subr.mxu0 0.0
    %1738 = vmatpush1.msra.mxu0 0.0
    %1739 = vmatprep.subr.mxu0 0.0
    %1740 = vmatpush1.msra.mxu0 0.0
    %1741 = vmatprep.subr.mxu0 0.0
    %1742 = vmatpush1.msra.mxu0 0.0
    %1743 = vmatprep.subr.mxu0 0.0
    %1744 = vmatpush1.msra.mxu0 0.0
    %1745 = vmatprep.subr.mxu0 0.0
    %1746 = vmatpush1.msra.mxu0 0.0
    %1747 = vmatprep.subr.mxu0 0.0
    %1748 = vmatpush1.msra.mxu0 0.0
    %1749 = vmatprep.subr.mxu0 0.0
    %1750 = vmatpush1.msra.mxu0 0.0
    %1751 = vmatprep.subr.mxu0 0.0
    %1752 = vmatpush1.msra.mxu0 0.0
    %1753 = vmatprep.subr.mxu0 0.0
    %1754 = vmatpush1.msra.mxu0 0.0
    %1755 = vmatprep.subr.mxu0 0.0
    %1756 = vmatpush1.msra.mxu0 0.0
    %1757 = vmatprep.mubr.f32.mxu0 0.0
    %1758 = vmatmul.mubr.f32.gmra.mrb[0].mxu0 %v1691
    %v1759 = vpop.f32.mrb[0].mxu0
    %v1760 = vadd.f32 %v1610, %v1759
    %v1761 = vpop.f32.mrb[0].mxu0
    %1762 = vdwg.mxu0
    %1764 = vrot.lane.b32.xlu0 %v1760, 16
    %v1765 = vpop.permute.xlu0 %1764
    %vm1767 = vcmask 261248
    %1768 = vst.msk [vmem:[#allocation8] sm:$0xff] %vm1767, %v1765
    %v1769 = vld [vmem:[#allocation2 + $0x8] sm:$0xff]
    %v1770 = vmax.f32 %v1769, 0.0
    %v1772 = vsel %vm757, %v1770, 0
    %1774 = vmatprep.subr.mxu0 0.0
    %1775 = vmatpush1.msra.mxu0 %v1595
    %1776 = vmatprep.subr.mxu0 0.0
    %1777 = vmatpush1.msra.mxu0 %v1596
    %1778 = vmatprep.subr.mxu0 0.0
    %1779 = vmatpush1.msra.mxu0 %v1597
    %1780 = vmatprep.subr.mxu0 0.0
    %1781 = vmatpush1.msra.mxu0 %v1598
    %1782 = vmatprep.subr.mxu0 0.0
    %1783 = vmatpush1.msra.mxu0 %v1599
    %1784 = vmatprep.subr.mxu0 0.0
    %1785 = vmatpush1.msra.mxu0 %v1600
    %1786 = vmatprep.subr.mxu0 0.0
    %1787 = vmatpush1.msra.mxu0 %v1601
    %1788 = vmatprep.subr.mxu0 0.0
    %1789 = vmatpush1.msra.mxu0 %v1602
    %1790 = vmatprep.subr.mxu0 0.0
    %1791 = vmatpush1.msra.mxu0 0.0
    %1792 = vmatprep.subr.mxu0 0.0
    %1793 = vmatpush1.msra.mxu0 0.0
    %1794 = vmatprep.subr.mxu0 0.0
    %1795 = vmatpush1.msra.mxu0 0.0
    %1796 = vmatprep.subr.mxu0 0.0
    %1797 = vmatpush1.msra.mxu0 0.0
    %1798 = vmatprep.subr.mxu0 0.0
    %1799 = vmatpush1.msra.mxu0 0.0
    %1800 = vmatprep.subr.mxu0 0.0
    %1801 = vmatpush1.msra.mxu0 0.0
    %1802 = vmatprep.subr.mxu0 0.0
    %1803 = vmatpush1.msra.mxu0 0.0
    %1804 = vmatprep.subr.mxu0 0.0
    %1805 = vmatpush1.msra.mxu0 0.0
    %1806 = vmatprep.subr.mxu0 0.0
    %1807 = vmatpush1.msra.mxu0 0.0
    %1808 = vmatprep.subr.mxu0 0.0
    %1809 = vmatpush1.msra.mxu0 0.0
    %1810 = vmatprep.subr.mxu0 0.0
    %1811 = vmatpush1.msra.mxu0 0.0
    %1812 = vmatprep.subr.mxu0 0.0
    %1813 = vmatpush1.msra.mxu0 0.0
    %1814 = vmatprep.subr.mxu0 0.0
    %1815 = vmatpush1.msra.mxu0 0.0
    %1816 = vmatprep.subr.mxu0 0.0
    %1817 = vmatpush1.msra.mxu0 0.0
    %1818 = vmatprep.subr.mxu0 0.0
    %1819 = vmatpush1.msra.mxu0 0.0
    %1820 = vmatprep.subr.mxu0 0.0
    %1821 = vmatpush1.msra.mxu0 0.0
    %1822 = vmatprep.subr.mxu0 0.0
    %1823 = vmatpush1.msra.mxu0 0.0
    %1824 = vmatprep.subr.mxu0 0.0
    %1825 = vmatpush1.msra.mxu0 0.0
    %1826 = vmatprep.subr.mxu0 0.0
    %1827 = vmatpush1.msra.mxu0 0.0
    %1828 = vmatprep.subr.mxu0 0.0
    %1829 = vmatpush1.msra.mxu0 0.0
    %1830 = vmatprep.subr.mxu0 0.0
    %1831 = vmatpush1.msra.mxu0 0.0
    %1832 = vmatprep.subr.mxu0 0.0
    %1833 = vmatpush1.msra.mxu0 0.0
    %1834 = vmatprep.subr.mxu0 0.0
    %1835 = vmatpush1.msra.mxu0 0.0
    %1836 = vmatprep.subr.mxu0 0.0
    %1837 = vmatpush1.msra.mxu0 0.0
    %1838 = vmatprep.mubr.f32.mxu0 0.0
    %1839 = vmatmul.mubr.f32.gmra.mrb[0].mxu0 %v1772
    %v1840 = vpop.f32.mrb[0].mxu0
    %v1841 = vadd.f32 %v1610, %v1840
    %v1842 = vpop.f32.mrb[0].mxu0
    %1843 = vdwg.mxu0
    %1845 = vrot.lane.b32.xlu0 %v1841, 32
    %v1846 = vpop.permute.xlu0 %1845
    %vm1848 = vcmask 392448
    %1849 = vst.msk [vmem:[#allocation8] sm:$0xff] %vm1848, %v1846
    %v1850 = vld [vmem:[#allocation2 + $0x8] sm:$0xff]
    %v1851 = vmax.f32 %v1850, 0.0
    %1853 = vrot.lane.b32.xlu0 %v1851, 64
    %v1854 = vpop.permute.xlu0 %1853
    %v1855 = vsel %vm757, %v1854, 0
    %1857 = vmatprep.subr.mxu0 0.0
    %1858 = vmatpush1.msra.mxu0 %v1595
    %1859 = vmatprep.subr.mxu0 0.0
    %1860 = vmatpush1.msra.mxu0 %v1596
    %1861 = vmatprep.subr.mxu0 0.0
    %1862 = vmatpush1.msra.mxu0 %v1597
    %1863 = vmatprep.subr.mxu0 0.0
    %1864 = vmatpush1.msra.mxu0 %v1598
    %1865 = vmatprep.subr.mxu0 0.0
    %1866 = vmatpush1.msra.mxu0 %v1599
    %1867 = vmatprep.subr.mxu0 0.0
    %1868 = vmatpush1.msra.mxu0 %v1600
    %1869 = vmatprep.subr.mxu0 0.0
    %1870 = vmatpush1.msra.mxu0 %v1601
    %1871 = vmatprep.subr.mxu0 0.0
    %1872 = vmatpush1.msra.mxu0 %v1602
    %1873 = vmatprep.subr.mxu0 0.0
    %1874 = vmatpush1.msra.mxu0 0.0
    %1875 = vmatprep.subr.mxu0 0.0
    %1876 = vmatpush1.msra.mxu0 0.0
    %1877 = vmatprep.subr.mxu0 0.0
    %1878 = vmatpush1.msra.mxu0 0.0
    %1879 = vmatprep.subr.mxu0 0.0
    %1880 = vmatpush1.msra.mxu0 0.0
    %1881 = vmatprep.subr.mxu0 0.0
    %1882 = vmatpush1.msra.mxu0 0.0
    %1883 = vmatprep.subr.mxu0 0.0
    %1884 = vmatpush1.msra.mxu0 0.0
    %1885 = vmatprep.subr.mxu0 0.0
    %1886 = vmatpush1.msra.mxu0 0.0
    %1887 = vmatprep.subr.mxu0 0.0
    %1888 = vmatpush1.msra.mxu0 0.0
    %1889 = vmatprep.subr.mxu0 0.0
    %1890 = vmatpush1.msra.mxu0 0.0
    %1891 = vmatprep.subr.mxu0 0.0
    %1892 = vmatpush1.msra.mxu0 0.0
    %1893 = vmatprep.subr.mxu0 0.0
    %1894 = vmatpush1.msra.mxu0 0.0
    %1895 = vmatprep.subr.mxu0 0.0
    %1896 = vmatpush1.msra.mxu0 0.0
    %1897 = vmatprep.subr.mxu0 0.0
    %1898 = vmatpush1.msra.mxu0 0.0
    %1899 = vmatprep.subr.mxu0 0.0
    %1900 = vmatpush1.msra.mxu0 0.0
    %1901 = vmatprep.subr.mxu0 0.0
    %1902 = vmatpush1.msra.mxu0 0.0
    %1903 = vmatprep.subr.mxu0 0.0
    %1904 = vmatpush1.msra.mxu0 0.0
    %1905 = vmatprep.subr.mxu0 0.0
    %1906 = vmatpush1.msra.mxu0 0.0
    %1907 = vmatprep.subr.mxu0 0.0
    %1908 = vmatpush1.msra.mxu0 0.0
    %1909 = vmatprep.subr.mxu0 0.0
    %1910 = vmatpush1.msra.mxu0 0.0
    %1911 = vmatprep.subr.mxu0 0.0
    %1912 = vmatpush1.msra.mxu0 0.0
    %1913 = vmatprep.subr.mxu0 0.0
    %1914 = vmatpush1.msra.mxu0 0.0
    %1915 = vmatprep.subr.mxu0 0.0
    %1916 = vmatpush1.msra.mxu0 0.0
    %1917 = vmatprep.subr.mxu0 0.0
    %1918 = vmatpush1.msra.mxu0 0.0
    %1919 = vmatprep.subr.mxu0 0.0
    %1920 = vmatpush1.msra.mxu0 0.0
    %1921 = vmatprep.mubr.f32.mxu0 0.0
    %1922 = vmatmul.mubr.f32.gmra.mrb[0].mxu0 %v1855
    %v1923 = vpop.f32.mrb[0].mxu0
    %v1924 = vadd.f32 %v1610, %v1923
    %v1925 = vpop.f32.mrb[0].mxu0
    %1926 = vdwg.mxu0
    %1928 = vrot.lane.b32.xlu0 %v1924, 48
    %v1929 = vpop.permute.xlu0 %1928
    %vm1931 = vcmask 523648
    %1932 = vst.msk [vmem:[#allocation8] sm:$0xff] %vm1931, %v1929
    %v1933 = vld [vmem:[#allocation2 + $0x10] sm:$0xff]
    %v1934 = vmax.f32 %v1933, 0.0
    %v1936 = vsel %vm757, %v1934, 0
    %1938 = vmatprep.subr.mxu0 0.0
    %1939 = vmatpush1.msra.mxu0 %v1595
    %1940 = vmatprep.subr.mxu0 0.0
    %1941 = vmatpush1.msra.mxu0 %v1596
    %1942 = vmatprep.subr.mxu0 0.0
    %1943 = vmatpush1.msra.mxu0 %v1597
    %1944 = vmatprep.subr.mxu0 0.0
    %1945 = vmatpush1.msra.mxu0 %v1598
    %1946 = vmatprep.subr.mxu0 0.0
    %1947 = vmatpush1.msra.mxu0 %v1599
    %1948 = vmatprep.subr.mxu0 0.0
    %1949 = vmatpush1.msra.mxu0 %v1600
    %1950 = vmatprep.subr.mxu0 0.0
    %1951 = vmatpush1.msra.mxu0 %v1601
    %1952 = vmatprep.subr.mxu0 0.0
    %1953 = vmatpush1.msra.mxu0 %v1602
    %1954 = vmatprep.subr.mxu0 0.0
    %1955 = vmatpush1.msra.mxu0 0.0
    %1956 = vmatprep.subr.mxu0 0.0
    %1957 = vmatpush1.msra.mxu0 0.0
    %1958 = vmatprep.subr.mxu0 0.0
    %1959 = vmatpush1.msra.mxu0 0.0
    %1960 = vmatprep.subr.mxu0 0.0
    %1961 = vmatpush1.msra.mxu0 0.0
    %1962 = vmatprep.subr.mxu0 0.0
    %1963 = vmatpush1.msra.mxu0 0.0
    %1964 = vmatprep.subr.mxu0 0.0
    %1965 = vmatpush1.msra.mxu0 0.0
    %1966 = vmatprep.subr.mxu0 0.0
    %1967 = vmatpush1.msra.mxu0 0.0
    %1968 = vmatprep.subr.mxu0 0.0
    %1969 = vmatpush1.msra.mxu0 0.0
    %1970 = vmatprep.subr.mxu0 0.0
    %1971 = vmatpush1.msra.mxu0 0.0
    %1972 = vmatprep.subr.mxu0 0.0
    %1973 = vmatpush1.msra.mxu0 0.0
    %1974 = vmatprep.subr.mxu0 0.0
    %1975 = vmatpush1.msra.mxu0 0.0
    %1976 = vmatprep.subr.mxu0 0.0
    %1977 = vmatpush1.msra.mxu0 0.0
    %1978 = vmatprep.subr.mxu0 0.0
    %1979 = vmatpush1.msra.mxu0 0.0
    %1980 = vmatprep.subr.mxu0 0.0
    %1981 = vmatpush1.msra.mxu0 0.0
    %1982 = vmatprep.subr.mxu0 0.0
    %1983 = vmatpush1.msra.mxu0 0.0
    %1984 = vmatprep.subr.mxu0 0.0
    %1985 = vmatpush1.msra.mxu0 0.0
    %1986 = vmatprep.subr.mxu0 0.0
    %1987 = vmatpush1.msra.mxu0 0.0
    %1988 = vmatprep.subr.mxu0 0.0
    %1989 = vmatpush1.msra.mxu0 0.0
    %1990 = vmatprep.subr.mxu0 0.0
    %1991 = vmatpush1.msra.mxu0 0.0
    %1992 = vmatprep.subr.mxu0 0.0
    %1993 = vmatpush1.msra.mxu0 0.0
    %1994 = vmatprep.subr.mxu0 0.0
    %1995 = vmatpush1.msra.mxu0 0.0
    %1996 = vmatprep.subr.mxu0 0.0
    %1997 = vmatpush1.msra.mxu0 0.0
    %1998 = vmatprep.subr.mxu0 0.0
    %1999 = vmatpush1.msra.mxu0 0.0
    %2000 = vmatprep.subr.mxu0 0.0
    %2001 = vmatpush1.msra.mxu0 0.0
    %2002 = vmatprep.mubr.f32.mxu0 0.0
    %2003 = vmatmul.mubr.f32.gmra.mrb[0].mxu0 %v1936
    %v2004 = vpop.f32.mrb[0].mxu0
    %v2005 = vadd.f32 %v1610, %v2004
    %v2006 = vpop.f32.mrb[0].mxu0
    %2007 = vdwg.mxu0
    %2009 = vrot.lane.b32.xlu0 %v2005, 64
    %v2010 = vpop.permute.xlu0 %2009
    %vm2012 = vcmask 654848
    %2013 = vst.msk [vmem:[#allocation8] sm:$0xff] %vm2012, %v2010
    %v2014 = vld [vmem:[#allocation2 + $0x10] sm:$0xff]
    %v2015 = vmax.f32 %v2014, 0.0
    %2017 = vrot.lane.b32.xlu0 %v2015, 64
    %v2018 = vpop.permute.xlu0 %2017
    %v2019 = vsel %vm757, %v2018, 0
    %2021 = vmatprep.subr.mxu0 0.0
    %2022 = vmatpush1.msra.mxu0 %v1595
    %2023 = vmatprep.subr.mxu0 0.0
    %2024 = vmatpush1.msra.mxu0 %v1596
    %2025 = vmatprep.subr.mxu0 0.0
    %2026 = vmatpush1.msra.mxu0 %v1597
    %2027 = vmatprep.subr.mxu0 0.0
    %2028 = vmatpush1.msra.mxu0 %v1598
    %2029 = vmatprep.subr.mxu0 0.0
    %2030 = vmatpush1.msra.mxu0 %v1599
    %2031 = vmatprep.subr.mxu0 0.0
    %2032 = vmatpush1.msra.mxu0 %v1600
    %2033 = vmatprep.subr.mxu0 0.0
    %2034 = vmatpush1.msra.mxu0 %v1601
    %2035 = vmatprep.subr.mxu0 0.0
    %2036 = vmatpush1.msra.mxu0 %v1602
    %2037 = vmatprep.subr.mxu0 0.0
    %2038 = vmatpush1.msra.mxu0 0.0
    %2039 = vmatprep.subr.mxu0 0.0
    %2040 = vmatpush1.msra.mxu0 0.0
    %2041 = vmatprep.subr.mxu0 0.0
    %2042 = vmatpush1.msra.mxu0 0.0
    %2043 = vmatprep.subr.mxu0 0.0
    %2044 = vmatpush1.msra.mxu0 0.0
    %2045 = vmatprep.subr.mxu0 0.0
    %2046 = vmatpush1.msra.mxu0 0.0
    %2047 = vmatprep.subr.mxu0 0.0
    %2048 = vmatpush1.msra.mxu0 0.0
    %2049 = vmatprep.subr.mxu0 0.0
    %2050 = vmatpush1.msra.mxu0 0.0
    %2051 = vmatprep.subr.mxu0 0.0
    %2052 = vmatpush1.msra.mxu0 0.0
    %2053 = vmatprep.subr.mxu0 0.0
    %2054 = vmatpush1.msra.mxu0 0.0
    %2055 = vmatprep.subr.mxu0 0.0
    %2056 = vmatpush1.msra.mxu0 0.0
    %2057 = vmatprep.subr.mxu0 0.0
    %2058 = vmatpush1.msra.mxu0 0.0
    %2059 = vmatprep.subr.mxu0 0.0
    %2060 = vmatpush1.msra.mxu0 0.0
    %2061 = vmatprep.subr.mxu0 0.0
    %2062 = vmatpush1.msra.mxu0 0.0
    %2063 = vmatprep.subr.mxu0 0.0
    %2064 = vmatpush1.msra.mxu0 0.0
    %2065 = vmatprep.subr.mxu0 0.0
    %2066 = vmatpush1.msra.mxu0 0.0
    %2067 = vmatprep.subr.mxu0 0.0
    %2068 = vmatpush1.msra.mxu0 0.0
    %2069 = vmatprep.subr.mxu0 0.0
    %2070 = vmatpush1.msra.mxu0 0.0
    %2071 = vmatprep.subr.mxu0 0.0
    %2072 = vmatpush1.msra.mxu0 0.0
    %2073 = vmatprep.subr.mxu0 0.0
    %2074 = vmatpush1.msra.mxu0 0.0
    %2075 = vmatprep.subr.mxu0 0.0
    %2076 = vmatpush1.msra.mxu0 0.0
    %2077 = vmatprep.subr.mxu0 0.0
    %2078 = vmatpush1.msra.mxu0 0.0
    %2079 = vmatprep.subr.mxu0 0.0
    %2080 = vmatpush1.msra.mxu0 0.0
    %2081 = vmatprep.subr.mxu0 0.0
    %2082 = vmatpush1.msra.mxu0 0.0
    %2083 = vmatprep.subr.mxu0 0.0
    %2084 = vmatpush1.msra.mxu0 0.0
    %2085 = vmatprep.mubr.f32.mxu0 0.0
    %2086 = vmatmul.mubr.f32.gmra.mrb[0].mxu0 %v2019
    %v2087 = vpop.f32.mrb[0].mxu0
    %v2088 = vadd.f32 %v1610, %v2087
    %v2089 = vpop.f32.mrb[0].mxu0
    %2090 = vdwg.mxu0
    %2092 = vrot.lane.b32.xlu0 %v2088, 80
    %v2093 = vpop.permute.xlu0 %2092
    %vm2095 = vcmask 786048
    %2096 = vst.msk [vmem:[#allocation8] sm:$0xff] %vm2095, %v2093
    %v2097 = vld [vmem:[#allocation2 + $0x18] sm:$0xff]
    %v2098 = vmax.f32 %v2097, 0.0
    %v2100 = vsel %vm757, %v2098, 0
    %2102 = vmatprep.subr.mxu0 0.0
    %2103 = vmatpush1.msra.mxu0 %v1595
    %2104 = vmatprep.subr.mxu0 0.0
    %2105 = vmatpush1.msra.mxu0 %v1596
    %2106 = vmatprep.subr.mxu0 0.0
    %2107 = vmatpush1.msra.mxu0 %v1597
    %2108 = vmatprep.subr.mxu0 0.0
    %2109 = vmatpush1.msra.mxu0 %v1598
    %2110 = vmatprep.subr.mxu0 0.0
    %2111 = vmatpush1.msra.mxu0 %v1599
    %2112 = vmatprep.subr.mxu0 0.0
    %2113 = vmatpush1.msra.mxu0 %v1600
    %2114 = vmatprep.subr.mxu0 0.0
    %2115 = vmatpush1.msra.mxu0 %v1601
    %2116 = vmatprep.subr.mxu0 0.0
    %2117 = vmatpush1.msra.mxu0 %v1602
    %2118 = vmatprep.subr.mxu0 0.0
    %2119 = vmatpush1.msra.mxu0 0.0
    %2120 = vmatprep.subr.mxu0 0.0
    %2121 = vmatpush1.msra.mxu0 0.0
    %2122 = vmatprep.subr.mxu0 0.0
    %2123 = vmatpush1.msra.mxu0 0.0
    %2124 = vmatprep.subr.mxu0 0.0
    %2125 = vmatpush1.msra.mxu0 0.0
    %2126 = vmatprep.subr.mxu0 0.0
    %2127 = vmatpush1.msra.mxu0 0.0
    %2128 = vmatprep.subr.mxu0 0.0
    %2129 = vmatpush1.msra.mxu0 0.0
    %2130 = vmatprep.subr.mxu0 0.0
    %2131 = vmatpush1.msra.mxu0 0.0
    %2132 = vmatprep.subr.mxu0 0.0
    %2133 = vmatpush1.msra.mxu0 0.0
    %2134 = vmatprep.subr.mxu0 0.0
    %2135 = vmatpush1.msra.mxu0 0.0
    %2136 = vmatprep.subr.mxu0 0.0
    %2137 = vmatpush1.msra.mxu0 0.0
    %2138 = vmatprep.subr.mxu0 0.0
    %2139 = vmatpush1.msra.mxu0 0.0
    %2140 = vmatprep.subr.mxu0 0.0
    %2141 = vmatpush1.msra.mxu0 0.0
    %2142 = vmatprep.subr.mxu0 0.0
    %2143 = vmatpush1.msra.mxu0 0.0
    %2144 = vmatprep.subr.mxu0 0.0
    %2145 = vmatpush1.msra.mxu0 0.0
    %2146 = vmatprep.subr.mxu0 0.0
    %2147 = vmatpush1.msra.mxu0 0.0
    %2148 = vmatprep.subr.mxu0 0.0
    %2149 = vmatpush1.msra.mxu0 0.0
    %2150 = vmatprep.subr.mxu0 0.0
    %2151 = vmatpush1.msra.mxu0 0.0
    %2152 = vmatprep.subr.mxu0 0.0
    %2153 = vmatpush1.msra.mxu0 0.0
    %2154 = vmatprep.subr.mxu0 0.0
    %2155 = vmatpush1.msra.mxu0 0.0
    %2156 = vmatprep.subr.mxu0 0.0
    %2157 = vmatpush1.msra.mxu0 0.0
    %2158 = vmatprep.subr.mxu0 0.0
    %2159 = vmatpush1.msra.mxu0 0.0
    %2160 = vmatprep.subr.mxu0 0.0
    %2161 = vmatpush1.msra.mxu0 0.0
    %2162 = vmatprep.subr.mxu0 0.0
    %2163 = vmatpush1.msra.mxu0 0.0
    %2164 = vmatprep.subr.mxu0 0.0
    %2165 = vmatpush1.msra.mxu0 0.0
    %2166 = vmatprep.mubr.f32.mxu0 0.0
    %2167 = vmatmul.mubr.f32.gmra.mrb[0].mxu0 %v2100
    %v2168 = vpop.f32.mrb[0].mxu0
    %v2169 = vadd.f32 %v1610, %v2168
    %v2170 = vpop.f32.mrb[0].mxu0
    %2171 = vdwg.mxu0
    %2173 = vrot.lane.b32.xlu0 %v2169, 96
    %v2174 = vpop.permute.xlu0 %2173
    %vm2176 = vcmask 917248
    %2177 = vst.msk [vmem:[#allocation8] sm:$0xff] %vm2176, %v2174
    %v2178 = vld [vmem:[#allocation2 + $0x18] sm:$0xff]
    %v2179 = vmax.f32 %v2178, 0.0
    %2181 = vrot.lane.b32.xlu0 %v2179, 64
    %v2182 = vpop.permute.xlu0 %2181
    %v2183 = vsel %vm757, %v2182, 0
    %2185 = vmatprep.subr.mxu0 0.0
    %2186 = vmatpush1.msra.mxu0 %v1595
    %2187 = vmatprep.subr.mxu0 0.0
    %2188 = vmatpush1.msra.mxu0 %v1596
    %2189 = vmatprep.subr.mxu0 0.0
    %2190 = vmatpush1.msra.mxu0 %v1597
    %2191 = vmatprep.subr.mxu0 0.0
    %2192 = vmatpush1.msra.mxu0 %v1598
    %2193 = vmatprep.subr.mxu0 0.0
    %2194 = vmatpush1.msra.mxu0 %v1599
    %2195 = vmatprep.subr.mxu0 0.0
    %2196 = vmatpush1.msra.mxu0 %v1600
    %2197 = vmatprep.subr.mxu0 0.0
    %2198 = vmatpush1.msra.mxu0 %v1601
    %2199 = vmatprep.subr.mxu0 0.0
    %2200 = vmatpush1.msra.mxu0 %v1602
    %2201 = vmatprep.subr.mxu0 0.0
    %2202 = vmatpush1.msra.mxu0 0.0
    %2203 = vmatprep.subr.mxu0 0.0
    %2204 = vmatpush1.msra.mxu0 0.0
    %2205 = vmatprep.subr.mxu0 0.0
    %2206 = vmatpush1.msra.mxu0 0.0
    %2207 = vmatprep.subr.mxu0 0.0
    %2208 = vmatpush1.msra.mxu0 0.0
    %2209 = vmatprep.subr.mxu0 0.0
    %2210 = vmatpush1.msra.mxu0 0.0
    %2211 = vmatprep.subr.mxu0 0.0
    %2212 = vmatpush1.msra.mxu0 0.0
    %2213 = vmatprep.subr.mxu0 0.0
    %2214 = vmatpush1.msra.mxu0 0.0
    %2215 = vmatprep.subr.mxu0 0.0
    %2216 = vmatpush1.msra.mxu0 0.0
    %2217 = vmatprep.subr.mxu0 0.0
    %2218 = vmatpush1.msra.mxu0 0.0
    %2219 = vmatprep.subr.mxu0 0.0
    %2220 = vmatpush1.msra.mxu0 0.0
    %2221 = vmatprep.subr.mxu0 0.0
    %2222 = vmatpush1.msra.mxu0 0.0
    %2223 = vmatprep.subr.mxu0 0.0
    %2224 = vmatpush1.msra.mxu0 0.0
    %2225 = vmatprep.subr.mxu0 0.0
    %2226 = vmatpush1.msra.mxu0 0.0
    %2227 = vmatprep.subr.mxu0 0.0
    %2228 = vmatpush1.msra.mxu0 0.0
    %2229 = vmatprep.subr.mxu0 0.0
    %2230 = vmatpush1.msra.mxu0 0.0
    %2231 = vmatprep.subr.mxu0 0.0
    %2232 = vmatpush1.msra.mxu0 0.0
    %2233 = vmatprep.subr.mxu0 0.0
    %2234 = vmatpush1.msra.mxu0 0.0
    %2235 = vmatprep.subr.mxu0 0.0
    %2236 = vmatpush1.msra.mxu0 0.0
    %2237 = vmatprep.subr.mxu0 0.0
    %2238 = vmatpush1.msra.mxu0 0.0
    %2239 = vmatprep.subr.mxu0 0.0
    %2240 = vmatpush1.msra.mxu0 0.0
    %2241 = vmatprep.subr.mxu0 0.0
    %2242 = vmatpush1.msra.mxu0 0.0
    %2243 = vmatprep.subr.mxu0 0.0
    %2244 = vmatpush1.msra.mxu0 0.0
    %2245 = vmatprep.subr.mxu0 0.0
    %2246 = vmatpush1.msra.mxu0 0.0
    %2247 = vmatprep.subr.mxu0 0.0
    %2248 = vmatpush1.msra.mxu0 0.0
    %2249 = vmatprep.mubr.f32.mxu0 0.0
    %2250 = vmatmul.mubr.f32.gmra.mrb[0].mxu0 %v2183
    %v2251 = vpop.f32.mrb[0].mxu0
    %v2252 = vadd.f32 %v1610, %v2251
    %v2253 = vpop.f32.mrb[0].mxu0
    %2254 = vdwg.mxu0
    %2256 = vrot.lane.b32.xlu0 %v2252, 112
    %v2257 = vpop.permute.xlu0 %2256
    %vm2259 = vcmask 1048448
    %2260 = vst.msk [vmem:[#allocation8] sm:$0xff] %vm2259, %v2257
    // Predicated region
    $region34: #{tpu_custom_call.1} parent=1 // pred_check
      _
    $region35: #{tpu_custom_call.1} parent=1 // pred_check_branch
      %2262 = sbr.rel (0) target = $region37
    $region36: #{tpu_custom_call.1} parent=1 // pred_region
      %s2264 = ssub.s32 128, 128
      %2265 = vsyncadd [#allocation5], %s2264
      %s2267 = sshll.u32 [#allocation8], 4
      %s2268 = int_to_ptr.vmem [resolvable:$true] %s2267
      %2270 = dma.vmem_to_hbm [thread:$0]  %s2268, 128, %s6, [#allocation5]
    $region37: #{tpu_custom_call.1} parent=1 // pred_fallthru
      _
    // Predicated region
    $region38: #{tpu_custom_call.1} parent=1 // pred_check
      _
    $region39: #{tpu_custom_call.1} parent=1 // pred_check_branch
      %2272 = sbr.rel (0) target = $region41
    $region40: #{tpu_custom_call.1} parent=1 // pred_region
      %2273 = dma.done [#allocation5], 128
    $region41: #{tpu_custom_call.1} parent=1 // pred_fallthru
      _
    %2274 = vsyncpa [#allocation4], 1
    %2275 = vsyncpa [#allocation7], 1
    %2276 = vsyncpa [#allocation5], 1

</llo_original>
